<compile_context>
chip_gen: v6e
topology: v6e:2x2x1
jax: 0.10.0
libtpu: 0.0.40
codegen_flags: <defaults>
</compile_context>

<pallas_src>
import functools

import jax
import jax.numpy as jnp
from jax.experimental import pallas as pl
from jax.experimental.pallas import tpu as pltpu

LANE = 128


def _round_up(n, m):
    return ((n + m - 1) // m) * m


def _pack_weights(w_fc, w_out, w_out1, hidden_dim1, dtype):
    """Pack the three big Linear weights into one lane-padded (R, 128) buffer.

    Row layout (all offsets multiples of 8):
      [0,        3*H1)      w_fc.T   -> cols [0, H2)
      [off_out,  +128)      w_out.T  -> cols [0, H3)   (zero padded slab)
      [off_out1, +128)      w_out1.T -> cols [0, C)    (zero padded slab)
    """
    H1 = hidden_dim1
    H2 = w_fc.shape[0]
    H3 = w_out.shape[0]
    C = w_out1.shape[0]

    off_out = _round_up(3 * H1, 8)
    off_out1 = off_out + LANE
    rows = off_out1 + LANE

    buf = jnp.zeros((rows, LANE), jnp.float32)
    buf = buf.at[0:3 * H1, :H2].set(w_fc.T)
    buf = buf.at[off_out:off_out + H2, :H3].set(w_out.T)
    buf = buf.at[off_out1:off_out1 + H3, :C].set(w_out1.T)
    return buf.astype(dtype), off_out, off_out1


def _pack_aux(w_att, b_att, b_fc, b_out, b_out1, att_hops):
    """Small always-f32 operand: biases + lane-replicated lat_att weights.

    Row layout:
      0: b_fc (zero padded)   1: b_out   2: b_out1
      3: b_att replicated across lanes
      4..4+A: w_att[a] replicated across lanes
    """
    A = att_hops
    rows = _round_up(4 + A, 8)
    aux = jnp.zeros((rows, LANE), jnp.float32)
    aux = aux.at[0, :b_fc.shape[0]].set(b_fc)
    aux = aux.at[1, :b_out.shape[0]].set(b_out)
    aux = aux.at[2, :b_out1.shape[0]].set(b_out1)
    aux = aux.at[3, :].set(b_att[0])
    wa = jnp.broadcast_to(w_att.reshape(A, 1).astype(jnp.float32), (A, LANE))
    aux = aux.at[4:4 + A, :].set(wa)
    return aux


def _similarity_kernel(l_ref, r_ref, w_ref, aux_ref, o_ref, *,
                       att_hops, hidden_dim1, off_out, off_out1, num_classes):
    A, H1 = att_hops, hidden_dim1
    f32 = jnp.float32
    w_dt = w_ref.dtype

    # lat_att weights / bias (f32, lane-replicated rows) -> VPU reduction,
    # no MXU pass and no kron-expanded zero weight.
    watt = aux_ref[4:4 + A, 0:H1]          # (A, H1)
    batt = aux_ref[3:4, 0:H1]              # (1, H1)

    def lat_att(x_ref):
        x = x_ref[...].astype(f32)         # (tb, A*H1)
        acc = watt[0:1, :] * x[:, 0:H1]
        for a in range(1, A):              # unrolled, A is small
            acc = acc + watt[a:a + 1, :] * x[:, a * H1:(a + 1) * H1]
        return acc + batt                  # (tb, H1)

    l = lat_att(l_ref)
    r = lat_att(r_ref)

    # Distance features stay in vregs (no VMEM scratch round trip).
    absd = jnp.abs(l - r)
    mult = l * r
    mean = 0.5 * (l + r)

    # fc: one logical K=3*H1 contraction as three accumulated K=H1 MXU passes
    # against row slices of w_fc.T (avoids assembling [abs|mult|mean] in VMEM).
    fc = jnp.dot(absd.astype(w_dt), w_ref[0:H1, :], preferred_element_type=f32)
    fc = fc + jnp.dot(mult.astype(w_dt), w_ref[H1:2 * H1, :],
                      preferred_element_type=f32)
    fc = fc + jnp.dot(mean.astype(w_dt), w_ref[2 * H1:3 * H1, :],
                      preferred_element_type=f32)
    fc = fc + aux_ref[0:1, :]                       # b_fc (f32)
    fc = jnp.maximum(fc, 0.01 * fc)                 # leaky_relu(0.01)

    # out + exact sigmoid via a single EUP tanh.
    h = jnp.dot(fc.astype(w_dt), w_ref[off_out:off_out + LANE, :],
                preferred_element_type=f32) + aux_ref[1:2, :]
    fc2 = 0.5 * jnp.tanh(0.5 * h) + 0.5

    # out1 + log_softmax over the real classes (pad lanes masked).
    logits = jnp.dot(fc2.astype(w_dt), w_ref[off_out1:off_out1 + LANE, :],
                     preferred_element_type=f32) + aux_ref[2:3, :]

    col = jax.lax.broadcasted_iota(jnp.int32, logits.shape, 1)
    valid = col < num_classes
    logits = jnp.where(valid, logits, -1e30)
    m = jnp.max(logits, axis=-1, keepdims=True)
    z = logits - m
    sum_e = jnp.sum(jnp.where(valid, jnp.exp(z), 0.0), axis=-1, keepdims=True)
    logp = z - jnp.log(sum_e)

    # Narrow output: only the (padded) class lanes are written back to HBM.
    o_ref[...] = logp[:, :o_ref.shape[-1]]


def similarity_forward(lvec, rvec, params, *, tile_b=None, use_bf16=True):
    """Batched Similarity forward.

    lvec, rvec: (B, att_hops, hidden_dim1) float32
    returns:    (B, num_classes) float32 log-probabilities
    """
    assert lvec.ndim == 3 and lvec.shape == rvec.shape
    w_att, b_att, w_fc, b_fc, w_out, b_out, w_out1, b_out1 = params
    B, A, H1 = lvec.shape
    H2, H3, C = w_fc.shape[0], w_out.shape[0], w_out1.shape[0]
    assert H1 % 8 == 0 and H1 <= LANE
    assert H2 <= LANE and H3 <= LANE and C <= LANE

    in_dtype = jnp.bfloat16 if use_bf16 else jnp.float32

    packed_w, off_out, off_out1 = _pack_weights(w_fc, w_out, w_out1, H1, in_dtype)
    aux = _pack_aux(w_att, b_att, b_fc, b_out, b_out1, A)   # always f32

    # Reshape only (contiguous -> free); no concatenate, no extra HBM traffic.
    k_flat = A * H1
    x_l = lvec.reshape(B, k_flat).astype(in_dtype)
    x_r = rvec.reshape(B, k_flat).astype(in_dtype)

    # Several grid steps per TensorCore for pipelining; avoid huge tiles
    # (vreg pressure) for large B.
    if tile_b is None:
        tile_b = 64 if B <= 1024 else 256
    tile_b = max(8, min(_round_up(tile_b, 8), _round_up(B, 8)))

    b_pad = _round_up(B, tile_b)
    if b_pad != B:
        pad = ((0, b_pad - B), (0, 0))
        x_l = jnp.pad(x_l, pad)
        x_r = jnp.pad(x_r, pad)

    c_pad = _round_up(C, 8)

    kernel = functools.partial(
        _similarity_kernel, att_hops=A, hidden_dim1=H1,
        off_out=off_out, off_out1=off_out1, num_classes=C)

    # Rough VMEM budget: double-buffered x tiles + resident weights + output.
    est = (2 * 2 * tile_b * k_flat * x_l.dtype.itemsize
           + 2 * packed_w.size * packed_w.dtype.itemsize
           + 2 * aux.size * 4
           + 2 * tile_b * c_pad * 4)
    # Keep >= scoped defaults, cap below v7x's 64 MiB physical VMEM.
    vmem_limit = int(min(64 * 2 ** 20, max(32 * 2 ** 20, 2 * est)))

    out = pl.pallas_call(
        kernel,
        out_shape=jax.ShapeDtypeStruct((b_pad, c_pad), jnp.float32),
        grid=(b_pad // tile_b,),
        in_specs=[
            pl.BlockSpec((tile_b, k_flat), lambda i: (i, 0)),
            pl.BlockSpec((tile_b, k_flat), lambda i: (i, 0)),
            # Constant block index -> weights DMA'd once, VMEM-resident.
            pl.BlockSpec(packed_w.shape, lambda i: (0, 0)),
            pl.BlockSpec(aux.shape, lambda i: (0, 0)),
        ],
        out_specs=pl.BlockSpec((tile_b, c_pad), lambda i: (i, 0)),
        compiler_params=pltpu.CompilerParams(
            # Independent batch tiles: shard across both TensorCores on v7x.
            dimension_semantics=("parallel",),
            vmem_limit_bytes=vmem_limit,
        ),
    )(x_l, x_r, packed_w, aux)

    return out[:B, :C]


def reference_forward(lvec, rvec, params):
    """Pure-JAX batched reference matching the PyTorch forward (eval mode)."""
    w_att, b_att, w_fc, b_fc, w_out, b_out, w_out1, b_out1 = params
    # self.lat_att(lvec.t()).t() per pair == weighted sum over att_hops + bias
    l = jnp.einsum('bah,a->bh', lvec, w_att[0]) + b_att[0]
    r = jnp.einsum('bah,a->bh', rvec, w_att[0]) + b_att[0]
    mult = l * r
    absd = jnp.abs(l - r)
    mean = 0.5 * (l + r)
    fr = jnp.concatenate([absd, mult, mean], axis=-1)
    fc = jax.nn.leaky_relu(fr @ w_fc.T + b_fc, 0.01)
    fc2 = jax.nn.sigmoid(fc @ w_out.T + b_out)
    logits = fc2 @ w_out1.T + b_out1
    return jax.nn.log_softmax(logits, axis=-1)


if __name__ == "__main__":
    # Small shapes consistent with the module, batched over pairs.
    att_hops, hidden_dim1, hidden_dim2, hidden3, num_classes = 8, 32, 16, 8, 4
    batch = 256

    key = jax.random.PRNGKey(0)
    ks = jax.random.split(key, 10)

    # Deterministic synthetic parameters (shapes match the nn.Linear layers).
    w_att = jax.random.normal(ks[0], (1, att_hops), jnp.float32) * 0.2
    b_att = jax.random.normal(ks[1], (1,), jnp.float32) * 0.1
    w_fc = jax.random.normal(ks[2], (hidden_dim2, 3 * hidden_dim1), jnp.float32) * 0.1
    b_fc = jax.random.normal(ks[3], (hidden_dim2,), jnp.float32) * 0.1
    w_out = jax.random.normal(ks[4], (hidden3, hidden_dim2), jnp.float32) * 0.1
    b_out = jax.random.normal(ks[5], (hidden3,), jnp.float32) * 0.1
    w_out1 = jax.random.normal(ks[6], (num_classes, hidden3), jnp.float32) * 0.1
    b_out1 = jax.random.normal(ks[7], (num_classes,), jnp.float32) * 0.1
    params = (w_att, b_att, w_fc, b_fc, w_out, b_out, w_out1, b_out1)

    lvec = jax.random.normal(ks[8], (batch, att_hops, hidden_dim1), jnp.float32)
    rvec = jax.random.normal(ks[9], (batch, att_hops, hidden_dim1), jnp.float32)

    ref = reference_forward(lvec, rvec, params)

    # f32 path: exact sigmoid/leaky-relu, f32 biases -> tight tolerance.
    out_f32 = jax.block_until_ready(
        similarity_forward(lvec, rvec, params, use_bf16=False))
    assert out_f32.shape == (batch, num_classes)
    assert jnp.allclose(out_f32, ref, atol=5e-3, rtol=5e-3), (
        "f32 max|diff|", float(jnp.max(jnp.abs(out_f32 - ref))))

    # Default bf16 inputs/weights (f32 accumulation, f32 biases).
    out_bf16 = jax.block_until_ready(similarity_forward(lvec, rvec, params))
    assert out_bf16.shape == (batch, num_classes)
    assert jnp.allclose(out_bf16, ref, atol=5e-2, rtol=5e-2), (
        "bf16 max|diff|", float(jnp.max(jnp.abs(out_bf16 - ref))))

    print("KERNEL_OK")
</pallas_src>

<mosaic_0001>
module attributes {stable_mosaic.version = 11 : i64} {
  func.func @_similarity_kernel(%arg0: i32, %arg1: memref<64x256xf32, #tpu.memory_space<vmem>>, %arg2: memref<64x256xf32, #tpu.memory_space<vmem>>, %arg3: memref<352x128xf32, #tpu.memory_space<vmem>>, %arg4: memref<16x128xf32, #tpu.memory_space<vmem>>, %arg5: memref<64x8xf32, #tpu.memory_space<vmem>>) attributes {dimension_semantics = [#tpu.dimension_semantics<parallel>], iteration_bounds = array<i64: 4>, scalar_prefetch = 0 : i64, scratch_operands = 0 : i64, tpu.core_type = #tpu.core_type<tc>, window_params = [{transform_indices = @transform_0, window_bounds = array<i64: 64, 256>}, {transform_indices = @transform_1, window_bounds = array<i64: 64, 256>}, {pipeline_mode = #tpu.pipeline_mode<synchronous>, transform_indices = @transform_2, window_bounds = array<i64: 352, 128>}, {pipeline_mode = #tpu.pipeline_mode<synchronous>, transform_indices = @transform_3, window_bounds = array<i64: 16, 128>}, {transform_indices = @transform_4, window_bounds = array<i64: 64, 8>}]} {
    %c4 = arith.constant 4 : index
    %c0 = arith.constant 0 : index
    %0 = vector.load %arg4[%c4, %c0] : memref<16x128xf32, #tpu.memory_space<vmem>>, vector<8x32xf32>
    %c3 = arith.constant 3 : index
    %c0_0 = arith.constant 0 : index
    %1 = vector.load %arg4[%c3, %c0_0] : memref<16x128xf32, #tpu.memory_space<vmem>>, vector<1x32xf32>
    %c0_1 = arith.constant 0 : index
    %c0_2 = arith.constant 0 : index
    %2 = vector.load %arg1[%c0_1, %c0_2] : memref<64x256xf32, #tpu.memory_space<vmem>>, vector<64x256xf32>
    %3 = vector.extract_strided_slice %0 {offsets = [0, 0], sizes = [1, 32], strides = [1, 1]} : vector<8x32xf32> to vector<1x32xf32>
    %4 = vector.extract_strided_slice %2 {offsets = [0, 0], sizes = [64, 32], strides = [1, 1]} : vector<64x256xf32> to vector<64x32xf32>
    %5 = vector.broadcast %3 : vector<1x32xf32> to vector<64x32xf32>
    %6 = arith.mulf %5, %4 : vector<64x32xf32>
    %7 = vector.extract_strided_slice %0 {offsets = [1, 0], sizes = [1, 32], strides = [1, 1]} : vector<8x32xf32> to vector<1x32xf32>
    %8 = vector.extract_strided_slice %2 {offsets = [0, 32], sizes = [64, 32], strides = [1, 1]} : vector<64x256xf32> to vector<64x32xf32>
    %9 = vector.broadcast %7 : vector<1x32xf32> to vector<64x32xf32>
    %10 = arith.mulf %9, %8 : vector<64x32xf32>
    %11 = arith.addf %6, %10 : vector<64x32xf32>
    %12 = vector.extract_strided_slice %0 {offsets = [2, 0], sizes = [1, 32], strides = [1, 1]} : vector<8x32xf32> to vector<1x32xf32>
    %13 = vector.extract_strided_slice %2 {offsets = [0, 64], sizes = [64, 32], strides = [1, 1]} : vector<64x256xf32> to vector<64x32xf32>
    %14 = vector.broadcast %12 : vector<1x32xf32> to vector<64x32xf32>
    %15 = arith.mulf %14, %13 : vector<64x32xf32>
    %16 = arith.addf %11, %15 : vector<64x32xf32>
    %17 = vector.extract_strided_slice %0 {offsets = [3, 0], sizes = [1, 32], strides = [1, 1]} : vector<8x32xf32> to vector<1x32xf32>
    %18 = vector.extract_strided_slice %2 {offsets = [0, 96], sizes = [64, 32], strides = [1, 1]} : vector<64x256xf32> to vector<64x32xf32>
    %19 = vector.broadcast %17 : vector<1x32xf32> to vector<64x32xf32>
    %20 = arith.mulf %19, %18 : vector<64x32xf32>
    %21 = arith.addf %16, %20 : vector<64x32xf32>
    %22 = vector.extract_strided_slice %0 {offsets = [4, 0], sizes = [1, 32], strides = [1, 1]} : vector<8x32xf32> to vector<1x32xf32>
    %23 = vector.extract_strided_slice %2 {offsets = [0, 128], sizes = [64, 32], strides = [1, 1]} : vector<64x256xf32> to vector<64x32xf32>
    %24 = vector.broadcast %22 : vector<1x32xf32> to vector<64x32xf32>
    %25 = arith.mulf %24, %23 : vector<64x32xf32>
    %26 = arith.addf %21, %25 : vector<64x32xf32>
    %27 = vector.extract_strided_slice %0 {offsets = [5, 0], sizes = [1, 32], strides = [1, 1]} : vector<8x32xf32> to vector<1x32xf32>
    %28 = vector.extract_strided_slice %2 {offsets = [0, 160], sizes = [64, 32], strides = [1, 1]} : vector<64x256xf32> to vector<64x32xf32>
    %29 = vector.broadcast %27 : vector<1x32xf32> to vector<64x32xf32>
    %30 = arith.mulf %29, %28 : vector<64x32xf32>
    %31 = arith.addf %26, %30 : vector<64x32xf32>
    %32 = vector.extract_strided_slice %0 {offsets = [6, 0], sizes = [1, 32], strides = [1, 1]} : vector<8x32xf32> to vector<1x32xf32>
    %33 = vector.extract_strided_slice %2 {offsets = [0, 192], sizes = [64, 32], strides = [1, 1]} : vector<64x256xf32> to vector<64x32xf32>
    %34 = vector.broadcast %32 : vector<1x32xf32> to vector<64x32xf32>
    %35 = arith.mulf %34, %33 : vector<64x32xf32>
    %36 = arith.addf %31, %35 : vector<64x32xf32>
    %37 = vector.extract_strided_slice %0 {offsets = [7, 0], sizes = [1, 32], strides = [1, 1]} : vector<8x32xf32> to vector<1x32xf32>
    %38 = vector.extract_strided_slice %2 {offsets = [0, 224], sizes = [64, 32], strides = [1, 1]} : vector<64x256xf32> to vector<64x32xf32>
    %39 = vector.broadcast %37 : vector<1x32xf32> to vector<64x32xf32>
    %40 = arith.mulf %39, %38 : vector<64x32xf32>
    %41 = arith.addf %36, %40 : vector<64x32xf32>
    %42 = vector.broadcast %1 : vector<1x32xf32> to vector<64x32xf32>
    %43 = arith.addf %41, %42 : vector<64x32xf32>
    %c0_3 = arith.constant 0 : index
    %c0_4 = arith.constant 0 : index
    %44 = vector.load %arg2[%c0_3, %c0_4] : memref<64x256xf32, #tpu.memory_space<vmem>>, vector<64x256xf32>
    %45 = vector.extract_strided_slice %0 {offsets = [0, 0], sizes = [1, 32], strides = [1, 1]} : vector<8x32xf32> to vector<1x32xf32>
    %46 = vector.extract_strided_slice %44 {offsets = [0, 0], sizes = [64, 32], strides = [1, 1]} : vector<64x256xf32> to vector<64x32xf32>
    %47 = vector.broadcast %45 : vector<1x32xf32> to vector<64x32xf32>
    %48 = arith.mulf %47, %46 : vector<64x32xf32>
    %49 = vector.extract_strided_slice %0 {offsets = [1, 0], sizes = [1, 32], strides = [1, 1]} : vector<8x32xf32> to vector<1x32xf32>
    %50 = vector.extract_strided_slice %44 {offsets = [0, 32], sizes = [64, 32], strides = [1, 1]} : vector<64x256xf32> to vector<64x32xf32>
    %51 = vector.broadcast %49 : vector<1x32xf32> to vector<64x32xf32>
    %52 = arith.mulf %51, %50 : vector<64x32xf32>
    %53 = arith.addf %48, %52 : vector<64x32xf32>
    %54 = vector.extract_strided_slice %0 {offsets = [2, 0], sizes = [1, 32], strides = [1, 1]} : vector<8x32xf32> to vector<1x32xf32>
    %55 = vector.extract_strided_slice %44 {offsets = [0, 64], sizes = [64, 32], strides = [1, 1]} : vector<64x256xf32> to vector<64x32xf32>
    %56 = vector.broadcast %54 : vector<1x32xf32> to vector<64x32xf32>
    %57 = arith.mulf %56, %55 : vector<64x32xf32>
    %58 = arith.addf %53, %57 : vector<64x32xf32>
    %59 = vector.extract_strided_slice %0 {offsets = [3, 0], sizes = [1, 32], strides = [1, 1]} : vector<8x32xf32> to vector<1x32xf32>
    %60 = vector.extract_strided_slice %44 {offsets = [0, 96], sizes = [64, 32], strides = [1, 1]} : vector<64x256xf32> to vector<64x32xf32>
    %61 = vector.broadcast %59 : vector<1x32xf32> to vector<64x32xf32>
    %62 = arith.mulf %61, %60 : vector<64x32xf32>
    %63 = arith.addf %58, %62 : vector<64x32xf32>
    %64 = vector.extract_strided_slice %0 {offsets = [4, 0], sizes = [1, 32], strides = [1, 1]} : vector<8x32xf32> to vector<1x32xf32>
    %65 = vector.extract_strided_slice %44 {offsets = [0, 128], sizes = [64, 32], strides = [1, 1]} : vector<64x256xf32> to vector<64x32xf32>
    %66 = vector.broadcast %64 : vector<1x32xf32> to vector<64x32xf32>
    %67 = arith.mulf %66, %65 : vector<64x32xf32>
    %68 = arith.addf %63, %67 : vector<64x32xf32>
    %69 = vector.extract_strided_slice %0 {offsets = [5, 0], sizes = [1, 32], strides = [1, 1]} : vector<8x32xf32> to vector<1x32xf32>
    %70 = vector.extract_strided_slice %44 {offsets = [0, 160], sizes = [64, 32], strides = [1, 1]} : vector<64x256xf32> to vector<64x32xf32>
    %71 = vector.broadcast %69 : vector<1x32xf32> to vector<64x32xf32>
    %72 = arith.mulf %71, %70 : vector<64x32xf32>
    %73 = arith.addf %68, %72 : vector<64x32xf32>
    %74 = vector.extract_strided_slice %0 {offsets = [6, 0], sizes = [1, 32], strides = [1, 1]} : vector<8x32xf32> to vector<1x32xf32>
    %75 = vector.extract_strided_slice %44 {offsets = [0, 192], sizes = [64, 32], strides = [1, 1]} : vector<64x256xf32> to vector<64x32xf32>
    %76 = vector.broadcast %74 : vector<1x32xf32> to vector<64x32xf32>
    %77 = arith.mulf %76, %75 : vector<64x32xf32>
    %78 = arith.addf %73, %77 : vector<64x32xf32>
    %79 = vector.extract_strided_slice %0 {offsets = [7, 0], sizes = [1, 32], strides = [1, 1]} : vector<8x32xf32> to vector<1x32xf32>
    %80 = vector.extract_strided_slice %44 {offsets = [0, 224], sizes = [64, 32], strides = [1, 1]} : vector<64x256xf32> to vector<64x32xf32>
    %81 = vector.broadcast %79 : vector<1x32xf32> to vector<64x32xf32>
    %82 = arith.mulf %81, %80 : vector<64x32xf32>
    %83 = arith.addf %78, %82 : vector<64x32xf32>
    %84 = vector.broadcast %1 : vector<1x32xf32> to vector<64x32xf32>
    %85 = arith.addf %83, %84 : vector<64x32xf32>
    %86 = arith.subf %43, %85 : vector<64x32xf32>
    %87 = math.absf %86 : vector<64x32xf32>
    %88 = arith.mulf %43, %85 : vector<64x32xf32>
    %89 = arith.addf %43, %85 : vector<64x32xf32>
    %cst = arith.constant 5.000000e-01 : f32
    %90 = vector.broadcast %cst : f32 to vector<64x32xf32>
    %91 = arith.mulf %90, %89 : vector<64x32xf32>
    %c0_5 = arith.constant 0 : index
    %c0_6 = arith.constant 0 : index
    %92 = vector.load %arg3[%c0_5, %c0_6] : memref<352x128xf32, #tpu.memory_space<vmem>>, vector<32x128xf32>
    %cst_7 = arith.constant dense<0.000000e+00> : vector<64x128xf32>
    %93 = tpu.matmul %87, %92, %cst_7 {dimension_numbers = #tpu.dot_dimension_numbers<[1], [0], [0], [1], [0, 0, 1, 1], [], []>} : vector<64x32xf32>, vector<32x128xf32>, vector<64x128xf32> -> vector<64x128xf32>
    %c32 = arith.constant 32 : index
    %c0_8 = arith.constant 0 : index
    %94 = vector.load %arg3[%c32, %c0_8] : memref<352x128xf32, #tpu.memory_space<vmem>>, vector<32x128xf32>
    %cst_9 = arith.constant dense<0.000000e+00> : vector<64x128xf32>
    %95 = tpu.matmul %88, %94, %cst_9 {dimension_numbers = #tpu.dot_dimension_numbers<[1], [0], [0], [1], [0, 0, 1, 1], [], []>} : vector<64x32xf32>, vector<32x128xf32>, vector<64x128xf32> -> vector<64x128xf32>
    %96 = arith.addf %93, %95 : vector<64x128xf32>
    %c64 = arith.constant 64 : index
    %c0_10 = arith.constant 0 : index
    %97 = vector.load %arg3[%c64, %c0_10] : memref<352x128xf32, #tpu.memory_space<vmem>>, vector<32x128xf32>
    %cst_11 = arith.constant dense<0.000000e+00> : vector<64x128xf32>
    %98 = tpu.matmul %91, %97, %cst_11 {dimension_numbers = #tpu.dot_dimension_numbers<[1], [0], [0], [1], [0, 0, 1, 1], [], []>} : vector<64x32xf32>, vector<32x128xf32>, vector<64x128xf32> -> vector<64x128xf32>
    %99 = arith.addf %96, %98 : vector<64x128xf32>
    %c0_12 = arith.constant 0 : index
    %c0_13 = arith.constant 0 : index
    %100 = vector.load %arg4[%c0_12, %c0_13] : memref<16x128xf32, #tpu.memory_space<vmem>>, vector<1x128xf32>
    %101 = vector.broadcast %100 : vector<1x128xf32> to vector<64x128xf32>
    %102 = arith.addf %99, %101 : vector<64x128xf32>
    %cst_14 = arith.constant 0.00999999977 : f32
    %103 = vector.broadcast %cst_14 : f32 to vector<64x128xf32>
    %104 = arith.mulf %103, %102 : vector<64x128xf32>
    %105 = arith.maximumf %102, %104 : vector<64x128xf32>
    %c96 = arith.constant 96 : index
    %c0_15 = arith.constant 0 : index
    %106 = vector.load %arg3[%c96, %c0_15] : memref<352x128xf32, #tpu.memory_space<vmem>>, vector<128x128xf32>
    %cst_16 = arith.constant dense<0.000000e+00> : vector<64x128xf32>
    %107 = tpu.matmul %105, %106, %cst_16 {dimension_numbers = #tpu.dot_dimension_numbers<[1], [0], [0], [1], [0, 0, 1, 1], [], []>} : vector<64x128xf32>, vector<128x128xf32>, vector<64x128xf32> -> vector<64x128xf32>
    %c1 = arith.constant 1 : index
    %c0_17 = arith.constant 0 : index
    %108 = vector.load %arg4[%c1, %c0_17] : memref<16x128xf32, #tpu.memory_space<vmem>>, vector<1x128xf32>
    %109 = vector.broadcast %108 : vector<1x128xf32> to vector<64x128xf32>
    %110 = arith.addf %107, %109 : vector<64x128xf32>
    %cst_18 = arith.constant 5.000000e-01 : f32
    %111 = vector.broadcast %cst_18 : f32 to vector<64x128xf32>
    %112 = arith.mulf %111, %110 : vector<64x128xf32>
    %113 = math.tanh %112 : vector<64x128xf32>
    %cst_19 = arith.constant 5.000000e-01 : f32
    %114 = vector.broadcast %cst_19 : f32 to vector<64x128xf32>
    %115 = arith.mulf %114, %113 : vector<64x128xf32>
    %cst_20 = arith.constant 5.000000e-01 : f32
    %116 = vector.broadcast %cst_20 : f32 to vector<64x128xf32>
    %117 = arith.addf %115, %116 : vector<64x128xf32>
    %c224 = arith.constant 224 : index
    %c0_21 = arith.constant 0 : index
    %118 = vector.load %arg3[%c224, %c0_21] : memref<352x128xf32, #tpu.memory_space<vmem>>, vector<128x128xf32>
    %cst_22 = arith.constant dense<0.000000e+00> : vector<64x128xf32>
    %119 = tpu.matmul %117, %118, %cst_22 {dimension_numbers = #tpu.dot_dimension_numbers<[1], [0], [0], [1], [0, 0, 1, 1], [], []>} : vector<64x128xf32>, vector<128x128xf32>, vector<64x128xf32> -> vector<64x128xf32>
    %c2 = arith.constant 2 : index
    %c0_23 = arith.constant 0 : index
    %120 = vector.load %arg4[%c2, %c0_23] : memref<16x128xf32, #tpu.memory_space<vmem>>, vector<1x128xf32>
    %121 = vector.broadcast %120 : vector<1x128xf32> to vector<64x128xf32>
    %122 = arith.addf %119, %121 : vector<64x128xf32>
    %123 = tpu.iota {dimensions = array<i32: 1>} : vector<64x128xi32>
    %c4_i32 = arith.constant 4 : i32
    %124 = vector.broadcast %c4_i32 : i32 to vector<64x128xi32>
    %125 = arith.cmpi slt, %123, %124 : vector<64x128xi32>
    %cst_24 = arith.constant -1.000000e+30 : f32
    %126 = vector.broadcast %cst_24 : f32 to vector<64x128xf32>
    %127 = arith.select %125, %122, %126 : vector<64x128xi1>, vector<64x128xf32>
    %cst_25 = arith.constant dense<0xFF800000> : vector<64xf32>
    %128 = vector.multi_reduction <maximumf>, %127, %cst_25 [1] : vector<64x128xf32> to vector<64xf32>
    %129 = vector.shape_cast %128 : vector<64xf32> to vector<64x1xf32>
    %130 = vector.broadcast %129 : vector<64x1xf32> to vector<64x128xf32>
    %131 = arith.subf %127, %130 : vector<64x128xf32>
    %132 = math.exp %131 : vector<64x128xf32>
    %cst_26 = arith.constant 0.000000e+00 : f32
    %133 = vector.broadcast %cst_26 : f32 to vector<64x128xf32>
    %134 = arith.select %125, %132, %133 : vector<64x128xi1>, vector<64x128xf32>
    %cst_27 = arith.constant dense<0.000000e+00> : vector<64xf32>
    %135 = vector.multi_reduction <add>, %134, %cst_27 [1] : vector<64x128xf32> to vector<64xf32>
    %136 = vector.shape_cast %135 : vector<64xf32> to vector<64x1xf32>
    %137 = math.log %136 : vector<64x1xf32>
    %138 = vector.broadcast %137 : vector<64x1xf32> to vector<64x128xf32>
    %139 = arith.subf %131, %138 : vector<64x128xf32>
    %140 = vector.extract_strided_slice %139 {offsets = [0, 0], sizes = [64, 8], strides = [1, 1]} : vector<64x128xf32> to vector<64x8xf32>
    %c0_28 = arith.constant 0 : index
    %c0_29 = arith.constant 0 : index
    %141 = vector.load %arg5[%c0_28, %c0_29] : memref<64x8xf32, #tpu.memory_space<vmem>>, vector<64x8xf32>
    tpu.vector_store %arg5[%c0_28, %c0_29], %140 {strides = array<i32>} : memref<64x8xf32, #tpu.memory_space<vmem>>, vector<64x8xf32>,
    return
  }
  func.func @transform_0(%arg0: i32) -> (i32, i32) {
    %c0_i32 = arith.constant 0 : i32
    %c0_i32_0 = arith.constant 0 : i32
    return %arg0, %c0_i32 : i32, i32
  }
  func.func @transform_1(%arg0: i32) -> (i32, i32) {
    %c0_i32 = arith.constant 0 : i32
    %c0_i32_0 = arith.constant 0 : i32
    return %arg0, %c0_i32 : i32, i32
  }
  func.func @transform_2(%arg0: i32) -> (i32, i32) {
    %c0_i32 = arith.constant 0 : i32
    %c0_i32_0 = arith.constant 0 : i32
    %c0_i32_1 = arith.constant 0 : i32
    return %c0_i32, %c0_i32_0 : i32, i32
  }
  func.func @transform_3(%arg0: i32) -> (i32, i32) {
    %c0_i32 = arith.constant 0 : i32
    %c0_i32_0 = arith.constant 0 : i32
    %c0_i32_1 = arith.constant 0 : i32
    return %c0_i32, %c0_i32_0 : i32, i32
  }
  func.func @transform_4(%arg0: i32) -> (i32, i32) {
    %c0_i32 = arith.constant 0 : i32
    %c0_i32_0 = arith.constant 0 : i32
    return %arg0, %c0_i32 : i32, i32
  }
}

</mosaic_0001>

<llo_original>
// kernel: tpu_custom_call.1
$region0: #{tpu_custom_call.1}
  #allocation0 [shape = 'u32[]', space=smem, size = 0x4, offset = 0x4, fixed_abs, tag = 'smem constant byte address 0x4 - core index']
  #allocation1 [shape = 'u32[144,128]{1,0:T(1,128)}', space=vmem, size = 0x12000, scoped, tag = 'internal scratch']
  %s0 = inlined_call_operand.hbm [shape: f32[256,256], index: 0, kind: input, shape index: {}]
  %s1 = inlined_call_operand.hbm [shape: f32[256,256], index: 1, kind: input, shape index: {}]
  %s2 = inlined_call_operand.hbm [shape: f32[352,128], index: 2, kind: input, shape index: {}]
  %s3 = inlined_call_operand.hbm [shape: f32[16,128], index: 3, kind: input, shape index: {}]
  %s4 = inlined_call_operand.vmem [shape: f32[256,8], index: 4, kind: output, shape index: {}]
  %s5 = sld [smem:[#allocation0]]
  $region65: #{tpu_custom_call.1} parent=0
    _
  %s7 = ssub.s32 1, %s5
  %s8 = scalar_select 0, %s7, %s5
  $region1: #{tpu_custom_call.1} parent=0
    #allocation2 [shape = 'u8[131072]{0}', space=vmem, size = 0x20000, scoped, tag = 'input window, operand 0']
    #allocation3 [shape = 's32[2]{0}', space=sflag, size = 0x8, scoped, tag = 'scoped memory for tpu_custom_call.1']
    #allocation4 [shape = 'u8[131072]{0}', space=vmem, size = 0x20000, scoped, tag = 'input window, operand 1']
    #allocation5 [shape = 's32[2]{0}', space=sflag, size = 0x8, scoped, tag = 'scoped memory for tpu_custom_call.1']
    #allocation6 [shape = 'u8[180224]{0}', space=vmem, size = 0x2c000, scoped, tag = 'input window, operand 2, single buffered']
    #allocation7 [shape = 'u8[8192]{0}', space=vmem, size = 0x2000, scoped, tag = 'input window, operand 3, single buffered']
    #allocation8 [shape = 's32[1]{0}', space=sflag, size = 0x4, scoped, tag = 'scoped memory for tpu_custom_call.1']
    %9 = vsyncpa [#allocation3], 0
    %s10 = scalar_lea.sflag [#allocation3], 1
    %11 = vsyncpa %s10, 0
    %12 = vsyncpa [#allocation5], 0
    %s13 = scalar_lea.sflag [#allocation5], 1
    %14 = vsyncpa %s13, 0
    %15 = vsyncpa [#allocation8], 0
    loop: start=0, step=1, limit=6
    $region2: #{tpu_custom_call.1} parent=1 // loop_pre_header
      _
    $region3: #{tpu_custom_call.1} parent=1 // loop_header
      %s17 = sphi 0, %s21
      %p18 = scmp.ge.s32.totalorder %s17, 6
      %s27 = sphi 0, %s29
      %s30 = sphi 0, %s27
      %s31 = sphi 0, %s30
      %s47 = sphi 0, %s31
      %s53 = sphi 0, %s55
      %s56 = sphi 0, %s53
      %s57 = sphi 0, %s56
      %s73 = sphi 0, %s57
      %s77 = sphi 0, %s77
      %s79 = sphi 0, %s77
      %s80 = sphi 0, %s79
      %s94 = sphi 0, %s80
      %s98 = sphi 0, %s98
      %s100 = sphi 0, %s98
      %s101 = sphi 0, %s100
      %s115 = sphi 0, %s101
      %s121 = sphi 0, %s123
      %s124 = sphi 0, %s121
      %s125 = sphi 0, %s124
      %s141 = sphi 0, %s125
    $region4: #{tpu_custom_call.1} parent=1 // loop_header_branch
      %20 = sbr.rel (%p18) target = $region8
    $region5: #{tpu_custom_call.1} parent=1 // loop_body
      %s22 = ssub.s32 %s17, 1
      %s23 = ssub.s32 %s17, 2
      %s24 = sadd.s32 %s17, 1
      %s25 = ssub.s32 %s17, %s24
      %p26 = scmp.eq.s32.totalorder %s25, 0
      %s28 = sadd.s32 %s27, 1
      %s29 = scalar_select %p26, %s27, %s28
      %p32 = pneg %p26
      %p33 = scmp.eq.s32.totalorder %s17, 3
      %p34 = por %p32, %p33
      %p35 = scmp.ne.s32.totalorder %s27, %s30
      %p36 = scmp.eq.s32.totalorder %s17, 0
      %p37 = por %p35, %p36
      %p38 = scmp.ne.s32.totalorder %s27, %s30
      %p39 = scmp.eq.s32.totalorder %s22, 3
      %p40 = por %p38, %p39
      %p41 = scmp.ne.s32.totalorder %s30, %s31
      %p42 = scmp.eq.s32.totalorder %s22, 0
      %p43 = por %p41, %p42
      %p44 = scmp.ne.s32.totalorder %s30, %s31
      %p45 = scmp.eq.s32.totalorder %s23, 3
      %p46 = por %p44, %p45
      %p48 = scmp.ne.s32.totalorder %s31, %s47
      %p49 = scmp.eq.s32.totalorder %s23, 0
      %p50 = por %p48, %p49
      %s51 = ssub.s32 %s17, %s24
      %p52 = scmp.eq.s32.totalorder %s51, 0
      %s54 = sadd.s32 %s53, 1
      %s55 = scalar_select %p52, %s53, %s54
      %p58 = pneg %p52
      %p59 = scmp.eq.s32.totalorder %s17, 3
      %p60 = por %p58, %p59
      %p61 = scmp.ne.s32.totalorder %s53, %s56
      %p62 = scmp.eq.s32.totalorder %s17, 0
      %p63 = por %p61, %p62
      %p64 = scmp.ne.s32.totalorder %s53, %s56
      %p65 = scmp.eq.s32.totalorder %s22, 3
      %p66 = por %p64, %p65
      %p67 = scmp.ne.s32.totalorder %s56, %s57
      %p68 = scmp.eq.s32.totalorder %s22, 0
      %p69 = por %p67, %p68
      %p70 = scmp.ne.s32.totalorder %s56, %s57
      %p71 = scmp.eq.s32.totalorder %s23, 3
      %p72 = por %p70, %p71
      %p74 = scmp.ne.s32.totalorder %s57, %s73
      %p75 = scmp.eq.s32.totalorder %s23, 0
      %p76 = por %p74, %p75
      %s78 = sadd.s32 %s77, 1
      %p81 = scmp.eq.s32.totalorder %s17, 3
      %p82 = scmp.ne.s32.totalorder %s77, %s79
      %p83 = scmp.eq.s32.totalorder %s17, 0
      %p84 = por %p82, %p83
      %p85 = scmp.ne.s32.totalorder %s77, %s79
      %p86 = scmp.eq.s32.totalorder %s22, 3
      %p87 = por %p85, %p86
      %p88 = scmp.ne.s32.totalorder %s79, %s80
      %p89 = scmp.eq.s32.totalorder %s22, 0
      %p90 = por %p88, %p89
      %p91 = scmp.ne.s32.totalorder %s79, %s80
      %p92 = scmp.eq.s32.totalorder %s23, 3
      %p93 = por %p91, %p92
      %p95 = scmp.ne.s32.totalorder %s80, %s94
      %p96 = scmp.eq.s32.totalorder %s23, 0
      %p97 = por %p95, %p96
      %s99 = sadd.s32 %s98, 1
      %p102 = scmp.eq.s32.totalorder %s17, 3
      %p103 = scmp.ne.s32.totalorder %s98, %s100
      %p104 = scmp.eq.s32.totalorder %s17, 0
      %p105 = por %p103, %p104
      %p106 = scmp.ne.s32.totalorder %s98, %s100
      %p107 = scmp.eq.s32.totalorder %s22, 3
      %p108 = por %p106, %p107
      %p109 = scmp.ne.s32.totalorder %s100, %s101
      %p110 = scmp.eq.s32.totalorder %s22, 0
      %p111 = por %p109, %p110
      %p112 = scmp.ne.s32.totalorder %s100, %s101
      %p113 = scmp.eq.s32.totalorder %s23, 3
      %p114 = por %p112, %p113
      %p116 = scmp.ne.s32.totalorder %s101, %s115
      %p117 = scmp.eq.s32.totalorder %s23, 0
      %p118 = por %p116, %p117
      %s119 = ssub.s32 %s17, %s24
      %p120 = scmp.eq.s32.totalorder %s119, 0
      %s122 = sadd.s32 %s121, 1
      %s123 = scalar_select %p120, %s121, %s122
      %p126 = pneg %p120
      %p127 = scmp.eq.s32.totalorder %s17, 3
      %p128 = por %p126, %p127
      %p129 = scmp.ne.s32.totalorder %s121, %s124
      %p130 = scmp.eq.s32.totalorder %s17, 0
      %p131 = por %p129, %p130
      %p132 = scmp.ne.s32.totalorder %s121, %s124
      %p133 = scmp.eq.s32.totalorder %s22, 3
      %p134 = por %p132, %p133
      %p135 = scmp.ne.s32.totalorder %s124, %s125
      %p136 = scmp.eq.s32.totalorder %s22, 0
      %p137 = por %p135, %p136
      %p138 = scmp.ne.s32.totalorder %s124, %s125
      %p139 = scmp.eq.s32.totalorder %s23, 3
      %p140 = por %p138, %p139
      %p142 = scmp.ne.s32.totalorder %s125, %s141
      %p143 = scmp.eq.s32.totalorder %s23, 0
      %p144 = por %p142, %p143
      %p145 = scmp.le.s32.totalorder 1, %s17
      %p146 = scmp.lt.s32.totalorder %s17, 5
      %p147 = pnand %p145, %p146
      %p148 = pneg %p147
      // Predicated region
      $region9: #{tpu_custom_call.1} parent=5 // pred_check
        _
      $region10: #{tpu_custom_call.1} parent=5 // pred_check_branch
        %150 = sbr.rel (%p147) target = $region12
      $region11: #{tpu_custom_call.1} parent=5 // pred_region
        %s151 = ssub.s32 %s17, 1
        // Predicated region
        $region13: #{tpu_custom_call.1} parent=11 // pred_check
          %p152 = pneg %p90
        $region14: #{tpu_custom_call.1} parent=11 // pred_check_branch
          %154 = sbr.rel (%p152) target = $region16
        $region15: #{tpu_custom_call.1} parent=11 // pred_region
          %s156 = ssub.s32 5632, 5632
          %157 = vsyncadd [#allocation5], %s156
          %s158 = sshll.u32 [#allocation6], 4
          %s159 = int_to_ptr.vmem [resolvable:$true] %s158
          %164 = dma.hbm_to_vmem [thread:$0]  %s2, 5632, %s159, [#allocation5], 128, 128, 8
        $region16: #{tpu_custom_call.1} parent=11 // pred_fallthru
          _
        // Predicated region
        $region17: #{tpu_custom_call.1} parent=11 // pred_check
          %p165 = pneg %p111
        $region18: #{tpu_custom_call.1} parent=11 // pred_check_branch
          %167 = sbr.rel (%p165) target = $region20
        $region19: #{tpu_custom_call.1} parent=11 // pred_region
          %s169 = ssub.s32 256, 256
          %170 = vsyncadd [#allocation8], %s169
          %s171 = sshll.u32 [#allocation7], 4
          %s172 = int_to_ptr.vmem [resolvable:$true] %s171
          %177 = dma.hbm_to_vmem [thread:$0]  %s3, 256, %s172, [#allocation8], 128, 128, 8
        $region20: #{tpu_custom_call.1} parent=11 // pred_fallthru
          _
      $region12: #{tpu_custom_call.1} parent=5 // pred_fallthru
        _
      %p178 = scmp.lt.s32.totalorder %s17, 4
      // Predicated region
      $region21: #{tpu_custom_call.1} parent=5 // pred_check
        %p179 = pneg %p178
      $region22: #{tpu_custom_call.1} parent=5 // pred_check_branch
        %181 = sbr.rel (%p179) target = $region24
      $region23: #{tpu_custom_call.1} parent=5 // pred_region
        // Predicated region
        $region25: #{tpu_custom_call.1} parent=23 // pred_check
          %p182 = pneg %p37
        $region26: #{tpu_custom_call.1} parent=23 // pred_check_branch
          %184 = sbr.rel (%p182) target = $region28
        $region27: #{tpu_custom_call.1} parent=23 // pred_region
          %s185 = sand.u32 %s27, 1
          %s186 = scalar_lea.sflag [#allocation3], %s185
          %s187 = sand.u32 %s27, 1
          %s188 = smul.addr %s187, 128
          %s189 = scalar_lea.vmem [#allocation2], %s188
          %s190 = smul.u32 8, %s17
          %s192 = ssub.s32 2048, 2048
          %193 = vsyncadd %s186, %s192
          %s194 = smul.addr %s190, 2
          %s195 = smul.addr %s194, 128
          %s196 = scalar_lea.hbm %s0, %s195
          %s197 = sshll.u32 %s189, 4
          %s198 = int_to_ptr.vmem [resolvable:$true] %s197
          %203 = dma.hbm_to_vmem [thread:$0]  %s196, 2048, %s198, %s186, 256, 256, 16
        $region28: #{tpu_custom_call.1} parent=23 // pred_fallthru
          _
        // Predicated region
        $region29: #{tpu_custom_call.1} parent=23 // pred_check
          %p204 = pneg %p63
        $region30: #{tpu_custom_call.1} parent=23 // pred_check_branch
          %206 = sbr.rel (%p204) target = $region32
        $region31: #{tpu_custom_call.1} parent=23 // pred_region
          %s207 = sand.u32 %s17, 1
          %s208 = scalar_lea.sflag [#allocation5], %s207
          %s209 = sand.u32 %s53, 1
          %s210 = smul.addr %s209, 128
          %s211 = scalar_lea.vmem [#allocation4], %s210
          %s212 = smul.u32 8, %s17
          %s214 = ssub.s32 2048, 2048
          %215 = vsyncadd %s208, %s214
          %s216 = smul.addr %s212, 2
          %s217 = smul.addr %s216, 128
          %s218 = scalar_lea.hbm %s1, %s217
          %s219 = sshll.u32 %s211, 4
          %s220 = int_to_ptr.vmem [resolvable:$true] %s219
          %225 = dma.hbm_to_vmem [thread:$0]  %s218, 2048, %s220, %s208, 256, 256, 16
        $region32: #{tpu_custom_call.1} parent=23 // pred_fallthru
          _
      $region24: #{tpu_custom_call.1} parent=5 // pred_fallthru
        _
      %p226 = scmp.le.s32.totalorder 1, %s17
      %p227 = scmp.lt.s32.totalorder %s17, 5
      %p228 = pnand %p226, %p227
      %p229 = pneg %p228
      // Predicated region
      $region33: #{tpu_custom_call.1} parent=5 // pred_check
        _
      $region34: #{tpu_custom_call.1} parent=5 // pred_check_branch
        %231 = sbr.rel (%p228) target = $region36
      $region35: #{tpu_custom_call.1} parent=5 // pred_region
        %s232 = ssub.s32 %s17, 1
        %s233 = sand.u32 %s30, 1
        %s234 = scalar_lea.sflag [#allocation3], %s233
        %s235 = sand.u32 %s30, 1
        %s236 = smul.addr %s235, 128
        %s237 = scalar_lea.vmem [#allocation2], %s236
        // Predicated region
        $region37: #{tpu_custom_call.1} parent=35 // pred_check
          %p238 = pneg %p43
        $region38: #{tpu_custom_call.1} parent=35 // pred_check_branch
          %240 = sbr.rel (%p238) target = $region40
        $region39: #{tpu_custom_call.1} parent=35 // pred_region
          %241 = dma.done %s234, 2048
        $region40: #{tpu_custom_call.1} parent=35 // pred_fallthru
          _
        %s242 = sand.u32 %s22, 1
        %s243 = scalar_lea.sflag [#allocation5], %s242
        %s244 = sand.u32 %s56, 1
        %s245 = smul.addr %s244, 128
        %s246 = scalar_lea.vmem [#allocation4], %s245
        // Predicated region
        $region41: #{tpu_custom_call.1} parent=35 // pred_check
          %p247 = pneg %p69
        $region42: #{tpu_custom_call.1} parent=35 // pred_check_branch
          %249 = sbr.rel (%p247) target = $region44
        $region43: #{tpu_custom_call.1} parent=35 // pred_region
          %250 = dma.done %s243, 2048
        $region44: #{tpu_custom_call.1} parent=35 // pred_fallthru
          _
        // Predicated region
        $region45: #{tpu_custom_call.1} parent=35 // pred_check
          %p251 = pneg %p90
        $region46: #{tpu_custom_call.1} parent=35 // pred_check_branch
          %253 = sbr.rel (%p251) target = $region48
        $region47: #{tpu_custom_call.1} parent=35 // pred_region
          %254 = dma.done [#allocation5], 5632
        $region48: #{tpu_custom_call.1} parent=35 // pred_fallthru
          _
        // Predicated region
        $region49: #{tpu_custom_call.1} parent=35 // pred_check
          %p255 = pneg %p111
        $region50: #{tpu_custom_call.1} parent=35 // pred_check_branch
          %257 = sbr.rel (%p255) target = $region52
        $region51: #{tpu_custom_call.1} parent=35 // pred_region
          %258 = dma.done [#allocation8], 256
        $region52: #{tpu_custom_call.1} parent=35 // pred_fallthru
          _
        %s259 = sand.u32 %s30, 1
        %s260 = scalar_lea.sflag [#allocation3], %s259
        %s261 = sand.u32 %s30, 1
        %s262 = smul.addr %s261, 128
        %s263 = scalar_lea.vmem [#allocation2], %s262
        %p264 = pneg %p43
        %p265 = pneg %p40
        %s266 = sand.u32 %s22, 1
        %s267 = scalar_lea.sflag [#allocation5], %s266
        %s268 = sand.u32 %s56, 1
        %s269 = smul.addr %s268, 128
        %s270 = scalar_lea.vmem [#allocation4], %s269
        %p271 = pneg %p69
        %p272 = pneg %p66
        %p273 = pneg %p90
        %p274 = pneg %p87
        %p275 = pneg %p111
        %p276 = pneg %p108
        %p277 = pneg %p137
        %p278 = pneg %p134
        %s279 = smul.u32 8, %s22
        %p280 = scmp.lt.s32.totalorder %s279, 31
        %s281 = scalar_select %p280, %s279, 31
        %s282 = smul.addr %s281, 8
        %s283 = scalar_lea.vmem %s4, %s282
        %s284 = smul.u32 8, %s22
        %s285 = smul.u32 8, %s22
        %s286 = smul.u32 8, %s22
        %p287 = scmp.lt.s32.totalorder %s286, 31
        %s288 = scalar_select %p287, %s286, 31
        %s289 = smul.addr %s288, 8
        %s290 = scalar_lea.vmem %s4, %s289
        %s291 = smul.u32 8, %s22
        %v292 = vld [vmem:[#allocation7 + $0x4] sm:$0xff]
        %v293 = vld [vmem:[#allocation7 + $0x3] sm:$0x1]
        %v294 = vld [vmem:[%s237] sm:$0xff]
        %v295 = vld [vmem:[%s237 + $0x8] sm:$0xff]
        %v296 = vld [vmem:[%s237 + $0x10] sm:$0xff]
        %v297 = vld [vmem:[%s237 + $0x18] sm:$0xff]
        %v298 = vld [vmem:[%s237 + $0x20] sm:$0xff]
        %v299 = vld [vmem:[%s237 + $0x28] sm:$0xff]
        %v300 = vld [vmem:[%s237 + $0x30] sm:$0xff]
        %v301 = vld [vmem:[%s237 + $0x38] sm:$0xff]
        %v302 = vld [vmem:[%s237 + $0x40] sm:$0xff]
        %v303 = vld [vmem:[%s237 + $0x48] sm:$0xff]
        %v304 = vld [vmem:[%s237 + $0x50] sm:$0xff]
        %v305 = vld [vmem:[%s237 + $0x58] sm:$0xff]
        %v306 = vld [vmem:[%s237 + $0x60] sm:$0xff]
        %v307 = vld [vmem:[%s237 + $0x68] sm:$0xff]
        %v308 = vld [vmem:[%s237 + $0x70] sm:$0xff]
        %v309 = vld [vmem:[%s237 + $0x78] sm:$0xff]
        %v310 = vlaneseq
        %v311 = vshrl.u32 %v310, 7
        %v312 = vsub.s32 0, %v311
        %v313 = vrot.slane %v292, %v312
        %v314 = vmul.f32 %v313, %v294
        %v315 = vmul.f32 %v313, %v296
        %v316 = vmul.f32 %v313, %v298
        %v317 = vmul.f32 %v313, %v300
        %v318 = vmul.f32 %v313, %v302
        %v319 = vmul.f32 %v313, %v304
        %v320 = vmul.f32 %v313, %v306
        %v321 = vmul.f32 %v313, %v308
        %v322 = vlaneseq
        %v323 = vshrl.u32 %v322, 7
        %v324 = vsub.s32 1, %v323
        %v325 = vrot.slane %v292, %v324
        %334 = vrot.lane.b32.xlu0 %v294, 96
        %v335 = vpop.permute.xlu0 %334
        %336 = vrot.lane.b32.xlu0 %v296, 96
        %v337 = vpop.permute.xlu0 %336
        %338 = vrot.lane.b32.xlu0 %v298, 96
        %v339 = vpop.permute.xlu0 %338
        %340 = vrot.lane.b32.xlu0 %v300, 96
        %v341 = vpop.permute.xlu0 %340
        %342 = vrot.lane.b32.xlu0 %v302, 96
        %v343 = vpop.permute.xlu0 %342
        %344 = vrot.lane.b32.xlu0 %v304, 96
        %v345 = vpop.permute.xlu0 %344
        %346 = vrot.lane.b32.xlu0 %v306, 96
        %v347 = vpop.permute.xlu0 %346
        %348 = vrot.lane.b32.xlu0 %v308, 96
        %v349 = vpop.permute.xlu0 %348
        %v358 = vmul.f32 %v325, %v335
        %v359 = vmul.f32 %v325, %v337
        %v360 = vmul.f32 %v325, %v339
        %v361 = vmul.f32 %v325, %v341
        %v362 = vmul.f32 %v325, %v343
        %v363 = vmul.f32 %v325, %v345
        %v364 = vmul.f32 %v325, %v347
        %v365 = vmul.f32 %v325, %v349
        %v366 = vadd.f32 %v314, %v358
        %v367 = vadd.f32 %v315, %v359
        %v368 = vadd.f32 %v316, %v360
        %v369 = vadd.f32 %v317, %v361
        %v370 = vadd.f32 %v318, %v362
        %v371 = vadd.f32 %v319, %v363
        %v372 = vadd.f32 %v320, %v364
        %v373 = vadd.f32 %v321, %v365
        %v374 = vlaneseq
        %v375 = vshrl.u32 %v374, 7
        %v376 = vsub.s32 2, %v375
        %v377 = vrot.slane %v292, %v376
        %378 = vrot.lane.b32.xlu0 %v294, 64
        %v379 = vpop.permute.xlu0 %378
        %380 = vrot.lane.b32.xlu0 %v296, 64
        %v381 = vpop.permute.xlu0 %380
        %382 = vrot.lane.b32.xlu0 %v298, 64
        %v383 = vpop.permute.xlu0 %382
        %384 = vrot.lane.b32.xlu0 %v300, 64
        %v385 = vpop.permute.xlu0 %384
        %386 = vrot.lane.b32.xlu0 %v302, 64
        %v387 = vpop.permute.xlu0 %386
        %388 = vrot.lane.b32.xlu0 %v304, 64
        %v389 = vpop.permute.xlu0 %388
        %390 = vrot.lane.b32.xlu0 %v306, 64
        %v391 = vpop.permute.xlu0 %390
        %392 = vrot.lane.b32.xlu0 %v308, 64
        %v393 = vpop.permute.xlu0 %392
        %v402 = vmul.f32 %v377, %v379
        %v403 = vmul.f32 %v377, %v381
        %v404 = vmul.f32 %v377, %v383
        %v405 = vmul.f32 %v377, %v385
        %v406 = vmul.f32 %v377, %v387
        %v407 = vmul.f32 %v377, %v389
        %v408 = vmul.f32 %v377, %v391
        %v409 = vmul.f32 %v377, %v393
        %v410 = vadd.f32 %v366, %v402
        %v411 = vadd.f32 %v367, %v403
        %v412 = vadd.f32 %v368, %v404
        %v413 = vadd.f32 %v369, %v405
        %v414 = vadd.f32 %v370, %v406
        %v415 = vadd.f32 %v371, %v407
        %v416 = vadd.f32 %v372, %v408
        %v417 = vadd.f32 %v373, %v409
        %v418 = vlaneseq
        %v419 = vshrl.u32 %v418, 7
        %v420 = vsub.s32 3, %v419
        %v421 = vrot.slane %v292, %v420
        %422 = vrot.lane.b32.xlu0 %v294, 32
        %v423 = vpop.permute.xlu0 %422
        %424 = vrot.lane.b32.xlu0 %v296, 32
        %v425 = vpop.permute.xlu0 %424
        %426 = vrot.lane.b32.xlu0 %v298, 32
        %v427 = vpop.permute.xlu0 %426
        %428 = vrot.lane.b32.xlu0 %v300, 32
        %v429 = vpop.permute.xlu0 %428
        %430 = vrot.lane.b32.xlu0 %v302, 32
        %v431 = vpop.permute.xlu0 %430
        %432 = vrot.lane.b32.xlu0 %v304, 32
        %v433 = vpop.permute.xlu0 %432
        %434 = vrot.lane.b32.xlu0 %v306, 32
        %v435 = vpop.permute.xlu0 %434
        %436 = vrot.lane.b32.xlu0 %v308, 32
        %v437 = vpop.permute.xlu0 %436
        %v446 = vmul.f32 %v421, %v423
        %v447 = vmul.f32 %v421, %v425
        %v448 = vmul.f32 %v421, %v427
        %v449 = vmul.f32 %v421, %v429
        %v450 = vmul.f32 %v421, %v431
        %v451 = vmul.f32 %v421, %v433
        %v452 = vmul.f32 %v421, %v435
        %v453 = vmul.f32 %v421, %v437
        %v454 = vadd.f32 %v410, %v446
        %v455 = vadd.f32 %v411, %v447
        %v456 = vadd.f32 %v412, %v448
        %v457 = vadd.f32 %v413, %v449
        %v458 = vadd.f32 %v414, %v450
        %v459 = vadd.f32 %v415, %v451
        %v460 = vadd.f32 %v416, %v452
        %v461 = vadd.f32 %v417, %v453
        %v462 = vlaneseq
        %v463 = vshrl.u32 %v462, 7
        %v464 = vsub.s32 4, %v463
        %v465 = vrot.slane %v292, %v464
        %v466 = vmul.f32 %v465, %v295
        %v467 = vmul.f32 %v465, %v297
        %v468 = vmul.f32 %v465, %v299
        %v469 = vmul.f32 %v465, %v301
        %v470 = vmul.f32 %v465, %v303
        %v471 = vmul.f32 %v465, %v305
        %v472 = vmul.f32 %v465, %v307
        %v473 = vmul.f32 %v465, %v309
        %v474 = vadd.f32 %v454, %v466
        %v475 = vadd.f32 %v455, %v467
        %v476 = vadd.f32 %v456, %v468
        %v477 = vadd.f32 %v457, %v469
        %v478 = vadd.f32 %v458, %v470
        %v479 = vadd.f32 %v459, %v471
        %v480 = vadd.f32 %v460, %v472
        %v481 = vadd.f32 %v461, %v473
        %v482 = vlaneseq
        %v483 = vshrl.u32 %v482, 7
        %v484 = vsub.s32 5, %v483
        %v485 = vrot.slane %v292, %v484
        %494 = vrot.lane.b32.xlu0 %v295, 96
        %v495 = vpop.permute.xlu0 %494
        %496 = vrot.lane.b32.xlu0 %v297, 96
        %v497 = vpop.permute.xlu0 %496
        %498 = vrot.lane.b32.xlu0 %v299, 96
        %v499 = vpop.permute.xlu0 %498
        %500 = vrot.lane.b32.xlu0 %v301, 96
        %v501 = vpop.permute.xlu0 %500
        %502 = vrot.lane.b32.xlu0 %v303, 96
        %v503 = vpop.permute.xlu0 %502
        %504 = vrot.lane.b32.xlu0 %v305, 96
        %v505 = vpop.permute.xlu0 %504
        %506 = vrot.lane.b32.xlu0 %v307, 96
        %v507 = vpop.permute.xlu0 %506
        %508 = vrot.lane.b32.xlu0 %v309, 96
        %v509 = vpop.permute.xlu0 %508
        %v518 = vmul.f32 %v485, %v495
        %v519 = vmul.f32 %v485, %v497
        %v520 = vmul.f32 %v485, %v499
        %v521 = vmul.f32 %v485, %v501
        %v522 = vmul.f32 %v485, %v503
        %v523 = vmul.f32 %v485, %v505
        %v524 = vmul.f32 %v485, %v507
        %v525 = vmul.f32 %v485, %v509
        %v526 = vadd.f32 %v474, %v518
        %v527 = vadd.f32 %v475, %v519
        %v528 = vadd.f32 %v476, %v520
        %v529 = vadd.f32 %v477, %v521
        %v530 = vadd.f32 %v478, %v522
        %v531 = vadd.f32 %v479, %v523
        %v532 = vadd.f32 %v480, %v524
        %v533 = vadd.f32 %v481, %v525
        %v534 = vlaneseq
        %v535 = vshrl.u32 %v534, 7
        %v536 = vsub.s32 6, %v535
        %v537 = vrot.slane %v292, %v536
        %538 = vrot.lane.b32.xlu0 %v295, 64
        %v539 = vpop.permute.xlu0 %538
        %540 = vrot.lane.b32.xlu0 %v297, 64
        %v541 = vpop.permute.xlu0 %540
        %542 = vrot.lane.b32.xlu0 %v299, 64
        %v543 = vpop.permute.xlu0 %542
        %544 = vrot.lane.b32.xlu0 %v301, 64
        %v545 = vpop.permute.xlu0 %544
        %546 = vrot.lane.b32.xlu0 %v303, 64
        %v547 = vpop.permute.xlu0 %546
        %548 = vrot.lane.b32.xlu0 %v305, 64
        %v549 = vpop.permute.xlu0 %548
        %550 = vrot.lane.b32.xlu0 %v307, 64
        %v551 = vpop.permute.xlu0 %550
        %552 = vrot.lane.b32.xlu0 %v309, 64
        %v553 = vpop.permute.xlu0 %552
        %v562 = vmul.f32 %v537, %v539
        %v563 = vmul.f32 %v537, %v541
        %v564 = vmul.f32 %v537, %v543
        %v565 = vmul.f32 %v537, %v545
        %v566 = vmul.f32 %v537, %v547
        %v567 = vmul.f32 %v537, %v549
        %v568 = vmul.f32 %v537, %v551
        %v569 = vmul.f32 %v537, %v553
        %v570 = vadd.f32 %v526, %v562
        %v571 = vadd.f32 %v527, %v563
        %v572 = vadd.f32 %v528, %v564
        %v573 = vadd.f32 %v529, %v565
        %v574 = vadd.f32 %v530, %v566
        %v575 = vadd.f32 %v531, %v567
        %v576 = vadd.f32 %v532, %v568
        %v577 = vadd.f32 %v533, %v569
        %v578 = vlaneseq
        %v579 = vshrl.u32 %v578, 7
        %v580 = vsub.s32 7, %v579
        %v581 = vrot.slane %v292, %v580
        %582 = vrot.lane.b32.xlu0 %v295, 32
        %v583 = vpop.permute.xlu0 %582
        %584 = vrot.lane.b32.xlu0 %v297, 32
        %v585 = vpop.permute.xlu0 %584
        %586 = vrot.lane.b32.xlu0 %v299, 32
        %v587 = vpop.permute.xlu0 %586
        %588 = vrot.lane.b32.xlu0 %v301, 32
        %v589 = vpop.permute.xlu0 %588
        %590 = vrot.lane.b32.xlu0 %v303, 32
        %v591 = vpop.permute.xlu0 %590
        %592 = vrot.lane.b32.xlu0 %v305, 32
        %v593 = vpop.permute.xlu0 %592
        %594 = vrot.lane.b32.xlu0 %v307, 32
        %v595 = vpop.permute.xlu0 %594
        %596 = vrot.lane.b32.xlu0 %v309, 32
        %v597 = vpop.permute.xlu0 %596
        %v606 = vmul.f32 %v581, %v583
        %v607 = vmul.f32 %v581, %v585
        %v608 = vmul.f32 %v581, %v587
        %v609 = vmul.f32 %v581, %v589
        %v610 = vmul.f32 %v581, %v591
        %v611 = vmul.f32 %v581, %v593
        %v612 = vmul.f32 %v581, %v595
        %v613 = vmul.f32 %v581, %v597
        %v614 = vadd.f32 %v570, %v606
        %v615 = vadd.f32 %v571, %v607
        %v616 = vadd.f32 %v572, %v608
        %v617 = vadd.f32 %v573, %v609
        %v618 = vadd.f32 %v574, %v610
        %v619 = vadd.f32 %v575, %v611
        %v620 = vadd.f32 %v576, %v612
        %v621 = vadd.f32 %v577, %v613
        %v622 = vlaneseq
        %v623 = vshrl.u32 %v622, 7
        %v624 = vsub.s32 0, %v623
        %v625 = vrot.slane %v293, %v624
        %v626 = vadd.f32 %v614, %v625
        %v627 = vadd.f32 %v615, %v625
        %v628 = vadd.f32 %v616, %v625
        %v629 = vadd.f32 %v617, %v625
        %v630 = vadd.f32 %v618, %v625
        %v631 = vadd.f32 %v619, %v625
        %v632 = vadd.f32 %v620, %v625
        %v633 = vadd.f32 %v621, %v625
        %v634 = vld [vmem:[%s246] sm:$0xff]
        %v635 = vld [vmem:[%s246 + $0x8] sm:$0xff]
        %v636 = vld [vmem:[%s246 + $0x10] sm:$0xff]
        %v637 = vld [vmem:[%s246 + $0x18] sm:$0xff]
        %v638 = vld [vmem:[%s246 + $0x20] sm:$0xff]
        %v639 = vld [vmem:[%s246 + $0x28] sm:$0xff]
        %v640 = vld [vmem:[%s246 + $0x30] sm:$0xff]
        %v641 = vld [vmem:[%s246 + $0x38] sm:$0xff]
        %v642 = vld [vmem:[%s246 + $0x40] sm:$0xff]
        %v643 = vld [vmem:[%s246 + $0x48] sm:$0xff]
        %v644 = vld [vmem:[%s246 + $0x50] sm:$0xff]
        %v645 = vld [vmem:[%s246 + $0x58] sm:$0xff]
        %v646 = vld [vmem:[%s246 + $0x60] sm:$0xff]
        %v647 = vld [vmem:[%s246 + $0x68] sm:$0xff]
        %v648 = vld [vmem:[%s246 + $0x70] sm:$0xff]
        %v649 = vld [vmem:[%s246 + $0x78] sm:$0xff]
        %v650 = vmul.f32 %v313, %v634
        %v651 = vmul.f32 %v313, %v636
        %v652 = vmul.f32 %v313, %v638
        %v653 = vmul.f32 %v313, %v640
        %v654 = vmul.f32 %v313, %v642
        %v655 = vmul.f32 %v313, %v644
        %v656 = vmul.f32 %v313, %v646
        %v657 = vmul.f32 %v313, %v648
        %666 = vrot.lane.b32.xlu0 %v634, 96
        %v667 = vpop.permute.xlu0 %666
        %668 = vrot.lane.b32.xlu0 %v636, 96
        %v669 = vpop.permute.xlu0 %668
        %670 = vrot.lane.b32.xlu0 %v638, 96
        %v671 = vpop.permute.xlu0 %670
        %672 = vrot.lane.b32.xlu0 %v640, 96
        %v673 = vpop.permute.xlu0 %672
        %674 = vrot.lane.b32.xlu0 %v642, 96
        %v675 = vpop.permute.xlu0 %674
        %676 = vrot.lane.b32.xlu0 %v644, 96
        %v677 = vpop.permute.xlu0 %676
        %678 = vrot.lane.b32.xlu0 %v646, 96
        %v679 = vpop.permute.xlu0 %678
        %680 = vrot.lane.b32.xlu0 %v648, 96
        %v681 = vpop.permute.xlu0 %680
        %v690 = vmul.f32 %v325, %v667
        %v691 = vmul.f32 %v325, %v669
        %v692 = vmul.f32 %v325, %v671
        %v693 = vmul.f32 %v325, %v673
        %v694 = vmul.f32 %v325, %v675
        %v695 = vmul.f32 %v325, %v677
        %v696 = vmul.f32 %v325, %v679
        %v697 = vmul.f32 %v325, %v681
        %v698 = vadd.f32 %v650, %v690
        %v699 = vadd.f32 %v651, %v691
        %v700 = vadd.f32 %v652, %v692
        %v701 = vadd.f32 %v653, %v693
        %v702 = vadd.f32 %v654, %v694
        %v703 = vadd.f32 %v655, %v695
        %v704 = vadd.f32 %v656, %v696
        %v705 = vadd.f32 %v657, %v697
        %706 = vrot.lane.b32.xlu0 %v634, 64
        %v707 = vpop.permute.xlu0 %706
        %708 = vrot.lane.b32.xlu0 %v636, 64
        %v709 = vpop.permute.xlu0 %708
        %710 = vrot.lane.b32.xlu0 %v638, 64
        %v711 = vpop.permute.xlu0 %710
        %712 = vrot.lane.b32.xlu0 %v640, 64
        %v713 = vpop.permute.xlu0 %712
        %714 = vrot.lane.b32.xlu0 %v642, 64
        %v715 = vpop.permute.xlu0 %714
        %716 = vrot.lane.b32.xlu0 %v644, 64
        %v717 = vpop.permute.xlu0 %716
        %718 = vrot.lane.b32.xlu0 %v646, 64
        %v719 = vpop.permute.xlu0 %718
        %720 = vrot.lane.b32.xlu0 %v648, 64
        %v721 = vpop.permute.xlu0 %720
        %v730 = vmul.f32 %v377, %v707
        %v731 = vmul.f32 %v377, %v709
        %v732 = vmul.f32 %v377, %v711
        %v733 = vmul.f32 %v377, %v713
        %v734 = vmul.f32 %v377, %v715
        %v735 = vmul.f32 %v377, %v717
        %v736 = vmul.f32 %v377, %v719
        %v737 = vmul.f32 %v377, %v721
        %v738 = vadd.f32 %v698, %v730
        %v739 = vadd.f32 %v699, %v731
        %v740 = vadd.f32 %v700, %v732
        %v741 = vadd.f32 %v701, %v733
        %v742 = vadd.f32 %v702, %v734
        %v743 = vadd.f32 %v703, %v735
        %v744 = vadd.f32 %v704, %v736
        %v745 = vadd.f32 %v705, %v737
        %746 = vrot.lane.b32.xlu0 %v634, 32
        %v747 = vpop.permute.xlu0 %746
        %748 = vrot.lane.b32.xlu0 %v636, 32
        %v749 = vpop.permute.xlu0 %748
        %750 = vrot.lane.b32.xlu0 %v638, 32
        %v751 = vpop.permute.xlu0 %750
        %752 = vrot.lane.b32.xlu0 %v640, 32
        %v753 = vpop.permute.xlu0 %752
        %754 = vrot.lane.b32.xlu0 %v642, 32
        %v755 = vpop.permute.xlu0 %754
        %756 = vrot.lane.b32.xlu0 %v644, 32
        %v757 = vpop.permute.xlu0 %756
        %758 = vrot.lane.b32.xlu0 %v646, 32
        %v759 = vpop.permute.xlu0 %758
        %760 = vrot.lane.b32.xlu0 %v648, 32
        %v761 = vpop.permute.xlu0 %760
        %v770 = vmul.f32 %v421, %v747
        %v771 = vmul.f32 %v421, %v749
        %v772 = vmul.f32 %v421, %v751
        %v773 = vmul.f32 %v421, %v753
        %v774 = vmul.f32 %v421, %v755
        %v775 = vmul.f32 %v421, %v757
        %v776 = vmul.f32 %v421, %v759
        %v777 = vmul.f32 %v421, %v761
        %v778 = vadd.f32 %v738, %v770
        %v779 = vadd.f32 %v739, %v771
        %v780 = vadd.f32 %v740, %v772
        %v781 = vadd.f32 %v741, %v773
        %v782 = vadd.f32 %v742, %v774
        %v783 = vadd.f32 %v743, %v775
        %v784 = vadd.f32 %v744, %v776
        %v785 = vadd.f32 %v745, %v777
        %v786 = vmul.f32 %v465, %v635
        %v787 = vmul.f32 %v465, %v637
        %v788 = vmul.f32 %v465, %v639
        %v789 = vmul.f32 %v465, %v641
        %v790 = vmul.f32 %v465, %v643
        %v791 = vmul.f32 %v465, %v645
        %v792 = vmul.f32 %v465, %v647
        %v793 = vmul.f32 %v465, %v649
        %v794 = vadd.f32 %v778, %v786
        %v795 = vadd.f32 %v779, %v787
        %v796 = vadd.f32 %v780, %v788
        %v797 = vadd.f32 %v781, %v789
        %v798 = vadd.f32 %v782, %v790
        %v799 = vadd.f32 %v783, %v791
        %v800 = vadd.f32 %v784, %v792
        %v801 = vadd.f32 %v785, %v793
        %810 = vrot.lane.b32.xlu0 %v635, 96
        %v811 = vpop.permute.xlu0 %810
        %812 = vrot.lane.b32.xlu0 %v637, 96
        %v813 = vpop.permute.xlu0 %812
        %814 = vrot.lane.b32.xlu0 %v639, 96
        %v815 = vpop.permute.xlu0 %814
        %816 = vrot.lane.b32.xlu0 %v641, 96
        %v817 = vpop.permute.xlu0 %816
        %818 = vrot.lane.b32.xlu0 %v643, 96
        %v819 = vpop.permute.xlu0 %818
        %820 = vrot.lane.b32.xlu0 %v645, 96
        %v821 = vpop.permute.xlu0 %820
        %822 = vrot.lane.b32.xlu0 %v647, 96
        %v823 = vpop.permute.xlu0 %822
        %824 = vrot.lane.b32.xlu0 %v649, 96
        %v825 = vpop.permute.xlu0 %824
        %v834 = vmul.f32 %v485, %v811
        %v835 = vmul.f32 %v485, %v813
        %v836 = vmul.f32 %v485, %v815
        %v837 = vmul.f32 %v485, %v817
        %v838 = vmul.f32 %v485, %v819
        %v839 = vmul.f32 %v485, %v821
        %v840 = vmul.f32 %v485, %v823
        %v841 = vmul.f32 %v485, %v825
        %v842 = vadd.f32 %v794, %v834
        %v843 = vadd.f32 %v795, %v835
        %v844 = vadd.f32 %v796, %v836
        %v845 = vadd.f32 %v797, %v837
        %v846 = vadd.f32 %v798, %v838
        %v847 = vadd.f32 %v799, %v839
        %v848 = vadd.f32 %v800, %v840
        %v849 = vadd.f32 %v801, %v841
        %850 = vrot.lane.b32.xlu0 %v635, 64
        %v851 = vpop.permute.xlu0 %850
        %852 = vrot.lane.b32.xlu0 %v637, 64
        %v853 = vpop.permute.xlu0 %852
        %854 = vrot.lane.b32.xlu0 %v639, 64
        %v855 = vpop.permute.xlu0 %854
        %856 = vrot.lane.b32.xlu0 %v641, 64
        %v857 = vpop.permute.xlu0 %856
        %858 = vrot.lane.b32.xlu0 %v643, 64
        %v859 = vpop.permute.xlu0 %858
        %860 = vrot.lane.b32.xlu0 %v645, 64
        %v861 = vpop.permute.xlu0 %860
        %862 = vrot.lane.b32.xlu0 %v647, 64
        %v863 = vpop.permute.xlu0 %862
        %864 = vrot.lane.b32.xlu0 %v649, 64
        %v865 = vpop.permute.xlu0 %864
        %v874 = vmul.f32 %v537, %v851
        %v875 = vmul.f32 %v537, %v853
        %v876 = vmul.f32 %v537, %v855
        %v877 = vmul.f32 %v537, %v857
        %v878 = vmul.f32 %v537, %v859
        %v879 = vmul.f32 %v537, %v861
        %v880 = vmul.f32 %v537, %v863
        %v881 = vmul.f32 %v537, %v865
        %v882 = vadd.f32 %v842, %v874
        %v883 = vadd.f32 %v843, %v875
        %v884 = vadd.f32 %v844, %v876
        %v885 = vadd.f32 %v845, %v877
        %v886 = vadd.f32 %v846, %v878
        %v887 = vadd.f32 %v847, %v879
        %v888 = vadd.f32 %v848, %v880
        %v889 = vadd.f32 %v849, %v881
        %890 = vrot.lane.b32.xlu0 %v635, 32
        %v891 = vpop.permute.xlu0 %890
        %892 = vrot.lane.b32.xlu0 %v637, 32
        %v893 = vpop.permute.xlu0 %892
        %894 = vrot.lane.b32.xlu0 %v639, 32
        %v895 = vpop.permute.xlu0 %894
        %896 = vrot.lane.b32.xlu0 %v641, 32
        %v897 = vpop.permute.xlu0 %896
        %898 = vrot.lane.b32.xlu0 %v643, 32
        %v899 = vpop.permute.xlu0 %898
        %900 = vrot.lane.b32.xlu0 %v645, 32
        %v901 = vpop.permute.xlu0 %900
        %902 = vrot.lane.b32.xlu0 %v647, 32
        %v903 = vpop.permute.xlu0 %902
        %904 = vrot.lane.b32.xlu0 %v649, 32
        %v905 = vpop.permute.xlu0 %904
        %v914 = vmul.f32 %v581, %v891
        %v915 = vmul.f32 %v581, %v893
        %v916 = vmul.f32 %v581, %v895
        %v917 = vmul.f32 %v581, %v897
        %v918 = vmul.f32 %v581, %v899
        %v919 = vmul.f32 %v581, %v901
        %v920 = vmul.f32 %v581, %v903
        %v921 = vmul.f32 %v581, %v905
        %v922 = vadd.f32 %v882, %v914
        %v923 = vadd.f32 %v883, %v915
        %v924 = vadd.f32 %v884, %v916
        %v925 = vadd.f32 %v885, %v917
        %v926 = vadd.f32 %v886, %v918
        %v927 = vadd.f32 %v887, %v919
        %v928 = vadd.f32 %v888, %v920
        %v929 = vadd.f32 %v889, %v921
        %v930 = vadd.f32 %v922, %v625
        %v931 = vadd.f32 %v923, %v625
        %v932 = vadd.f32 %v924, %v625
        %v933 = vadd.f32 %v925, %v625
        %v934 = vadd.f32 %v926, %v625
        %v935 = vadd.f32 %v927, %v625
        %v936 = vadd.f32 %v928, %v625
        %v937 = vadd.f32 %v929, %v625
        %v938 = vsub.f32 %v626, %v930
        %v939 = vsub.f32 %v627, %v931
        %v940 = vsub.f32 %v628, %v932
        %v941 = vsub.f32 %v629, %v933
        %v942 = vsub.f32 %v630, %v934
        %v943 = vsub.f32 %v631, %v935
        %v944 = vsub.f32 %v632, %v936
        %v945 = vsub.f32 %v633, %v937
        %v946 = vand.u32 2147483647, %v938
        %v947 = vand.u32 2147483647, %v939
        %v948 = vand.u32 2147483647, %v940
        %v949 = vand.u32 2147483647, %v941
        %v950 = vand.u32 2147483647, %v942
        %v951 = vand.u32 2147483647, %v943
        %v952 = vand.u32 2147483647, %v944
        %v953 = vand.u32 2147483647, %v945
        %v954 = vmul.f32 %v626, %v930
        %v955 = vmul.f32 %v627, %v931
        %v956 = vmul.f32 %v628, %v932
        %v957 = vmul.f32 %v629, %v933
        %v958 = vmul.f32 %v630, %v934
        %v959 = vmul.f32 %v631, %v935
        %v960 = vmul.f32 %v632, %v936
        %v961 = vmul.f32 %v633, %v937
        %v962 = vadd.f32 %v626, %v930
        %v963 = vadd.f32 %v627, %v931
        %v964 = vadd.f32 %v628, %v932
        %v965 = vadd.f32 %v629, %v933
        %v966 = vadd.f32 %v630, %v934
        %v967 = vadd.f32 %v631, %v935
        %v968 = vadd.f32 %v632, %v936
        %v969 = vadd.f32 %v633, %v937
        %v970 = vmul.f32 %v962, 0.5
        %v971 = vmul.f32 %v963, 0.5
        %v972 = vmul.f32 %v964, 0.5
        %v973 = vmul.f32 %v965, 0.5
        %v974 = vmul.f32 %v966, 0.5
        %v975 = vmul.f32 %v967, 0.5
        %v976 = vmul.f32 %v968, 0.5
        %v977 = vmul.f32 %v969, 0.5
        %v978 = vld [vmem:[#allocation6] sm:$0xff]
        %v979 = vld [vmem:[#allocation6 + $0x8] sm:$0xff]
        %v980 = vld [vmem:[#allocation6 + $0x10] sm:$0xff]
        %v981 = vld [vmem:[#allocation6 + $0x18] sm:$0xff]
        %v982 = vld [vmem:[#allocation6 + $0x20] sm:$0xff]
        %v983 = vld [vmem:[#allocation6 + $0x28] sm:$0xff]
        %v984 = vld [vmem:[#allocation6 + $0x30] sm:$0xff]
        %v985 = vld [vmem:[#allocation6 + $0x38] sm:$0xff]
        %vm986 = vcmask 261120
        %v988 = vsel %vm986, %v954, 0
        %v991 = vsel %vm986, %v955, 0
        %v994 = vsel %vm986, %v956, 0
        %v997 = vsel %vm986, %v957, 0
        %v1000 = vsel %vm986, %v958, 0
        %v1003 = vsel %vm986, %v959, 0
        %v1006 = vsel %vm986, %v960, 0
        %v1009 = vsel %vm986, %v961, 0
        %1011 = vmatprep.subr.mxu0 0.0
        %1012 = vmatpush1.msra.mxu0 0.0
        %1013 = vmatprep.subr.mxu0 0.0
        %1014 = vmatpush1.msra.mxu0 0.0
        %1015 = vmatprep.subr.mxu0 0.0
        %1016 = vmatpush1.msra.mxu0 0.0
        %1017 = vmatprep.subr.mxu0 0.0
        %1018 = vmatpush1.msra.mxu0 0.0
        %1019 = vmatprep.subr.mxu0 0.0
        %1020 = vmatpush1.msra.mxu0 0.0
        %1021 = vmatprep.subr.mxu0 0.0
        %1022 = vmatpush1.msra.mxu0 0.0
        %1023 = vmatprep.subr.mxu0 0.0
        %1024 = vmatpush1.msra.mxu0 0.0
        %1025 = vmatprep.subr.mxu0 0.0
        %1026 = vmatpush1.msra.mxu0 0.0
        %1027 = vmatprep.subr.mxu0 0.0
        %1028 = vmatpush1.msra.mxu0 0.0
        %1029 = vmatprep.subr.mxu0 0.0
        %1030 = vmatpush1.msra.mxu0 0.0
        %1031 = vmatprep.subr.mxu0 0.0
        %1032 = vmatpush1.msra.mxu0 0.0
        %1033 = vmatprep.subr.mxu0 0.0
        %1034 = vmatpush1.msra.mxu0 0.0
        %1035 = vmatprep.subr.mxu0 0.0
        %1036 = vmatpush1.msra.mxu0 %v985
        %1037 = vmatprep.subr.mxu0 0.0
        %1038 = vmatpush1.msra.mxu0 %v984
        %1039 = vmatprep.subr.mxu0 0.0
        %1040 = vmatpush1.msra.mxu0 %v983
        %1041 = vmatprep.subr.mxu0 0.0
        %1042 = vmatpush1.msra.mxu0 %v982
        %1043 = vmatprep.subr.mxu0 0.0
        %1044 = vmatpush2.msra.mxu0 0.0
        %1045 = vmatprep.subr.mxu0 0.0
        %1046 = vmatpush2.msra.mxu0 0.0
        %1047 = vmatprep.subr.mxu0 0.0
        %1048 = vmatpush2.msra.mxu0 0.0
        %1049 = vmatprep.subr.mxu0 0.0
        %1050 = vmatpush2.msra.mxu0 0.0
        %1051 = vmatprep.subr.mxu0 0.0
        %1052 = vmatpush2.msra.mxu0 0.0
        %1053 = vmatprep.subr.mxu0 0.0
        %1054 = vmatpush2.msra.mxu0 0.0
        %1055 = vmatprep.subr.mxu0 0.0
        %1056 = vmatpush2.msra.mxu0 0.0
        %1057 = vmatprep.subr.mxu0 0.0
        %1058 = vmatpush2.msra.mxu0 0.0
        %1059 = vmatprep.subr.mxu0 0.0
        %1060 = vmatpush2.msra.mxu0 0.0
        %1061 = vmatprep.subr.mxu0 0.0
        %1062 = vmatpush2.msra.mxu0 0.0
        %1063 = vmatprep.subr.mxu0 0.0
        %1064 = vmatpush2.msra.mxu0 0.0
        %1065 = vmatprep.subr.mxu0 0.0
        %1066 = vmatpush2.msra.mxu0 0.0
        %1067 = vmatprep.subr.mxu0 0.0
        %1068 = vmatpush2.msra.mxu0 0.0
        %1069 = vmatprep.subr.mxu0 0.0
        %1070 = vmatpush2.msra.mxu0 0.0
        %1071 = vmatprep.subr.mxu0 0.0
        %1072 = vmatpush2.msra.mxu0 0.0
        %1073 = vmatprep.subr.mxu0 0.0
        %1074 = vmatpush2.msra.mxu0 0.0
        %1075 = vmatprep.mubr.f32.mxu0 0.0
        %1076 = vmatmul.mubr.f32.gmra.mxu0 %v988
        %v1077 = vpop.f32.mrf.mxu0
        %v1078 = vadd.f32 0.0, %v1077
        %v1079 = vpop.f32.mrf.mxu0
        %1080 = vmatprep.mubr.f32.mxu0 0.0
        %1081 = vmatmul.mubr.f32.gmra.mxu0 %v991
        %v1082 = vpop.f32.mrf.mxu0
        %v1083 = vadd.f32 0.0, %v1082
        %v1084 = vpop.f32.mrf.mxu0
        %1085 = vmatprep.mubr.f32.mxu0 0.0
        %1086 = vmatmul.mubr.f32.gmra.mxu0 %v994
        %v1087 = vpop.f32.mrf.mxu0
        %v1088 = vadd.f32 0.0, %v1087
        %v1089 = vpop.f32.mrf.mxu0
        %1090 = vmatprep.mubr.f32.mxu0 0.0
        %1091 = vmatmul.mubr.f32.gmra.mxu0 %v997
        %v1092 = vpop.f32.mrf.mxu0
        %v1093 = vadd.f32 0.0, %v1092
        %v1094 = vpop.f32.mrf.mxu0
        %1095 = vmatprep.mubr.f32.mxu0 0.0
        %1096 = vmatmul.mubr.f32.gmra.mxu0 %v1000
        %v1097 = vpop.f32.mrf.mxu0
        %v1098 = vadd.f32 0.0, %v1097
        %v1099 = vpop.f32.mrf.mxu0
        %1100 = vmatprep.mubr.f32.mxu0 0.0
        %1101 = vmatmul.mubr.f32.gmra.mxu0 %v1003
        %v1102 = vpop.f32.mrf.mxu0
        %v1103 = vadd.f32 0.0, %v1102
        %v1104 = vpop.f32.mrf.mxu0
        %1105 = vmatprep.mubr.f32.mxu0 0.0
        %1106 = vmatmul.mubr.f32.gmra.mxu0 %v1006
        %v1107 = vpop.f32.mrf.mxu0
        %v1108 = vadd.f32 0.0, %v1107
        %v1109 = vpop.f32.mrf.mxu0
        %1110 = vmatprep.mubr.f32.mxu0 0.0
        %1111 = vmatmul.mubr.f32.gmra.mxu0 %v1009
        %v1112 = vpop.f32.mrf.mxu0
        %v1113 = vadd.f32 0.0, %v1112
        %v1114 = vpop.f32.mrf.mxu0
        %1115 = vdwg.mxu0
        %v1117 = vsel %vm986, %v946, 0
        %v1120 = vsel %vm986, %v947, 0
        %v1123 = vsel %vm986, %v948, 0
        %v1126 = vsel %vm986, %v949, 0
        %v1129 = vsel %vm986, %v950, 0
        %v1132 = vsel %vm986, %v951, 0
        %v1135 = vsel %vm986, %v952, 0
        %v1138 = vsel %vm986, %v953, 0
        %1140 = vmatprep.subr.mxu0 0.0
        %1141 = vmatpush1.msra.mxu0 0.0
        %1142 = vmatprep.subr.mxu0 0.0
        %1143 = vmatpush1.msra.mxu0 0.0
        %1144 = vmatprep.subr.mxu0 0.0
        %1145 = vmatpush1.msra.mxu0 0.0
        %1146 = vmatprep.subr.mxu0 0.0
        %1147 = vmatpush1.msra.mxu0 0.0
        %1148 = vmatprep.subr.mxu0 0.0
        %1149 = vmatpush1.msra.mxu0 0.0
        %1150 = vmatprep.subr.mxu0 0.0
        %1151 = vmatpush1.msra.mxu0 0.0
        %1152 = vmatprep.subr.mxu0 0.0
        %1153 = vmatpush1.msra.mxu0 0.0
        %1154 = vmatprep.subr.mxu0 0.0
        %1155 = vmatpush1.msra.mxu0 0.0
        %1156 = vmatprep.subr.mxu0 0.0
        %1157 = vmatpush1.msra.mxu0 0.0
        %1158 = vmatprep.subr.mxu0 0.0
        %1159 = vmatpush1.msra.mxu0 0.0
        %1160 = vmatprep.subr.mxu0 0.0
        %1161 = vmatpush1.msra.mxu0 0.0
        %1162 = vmatprep.subr.mxu0 0.0
        %1163 = vmatpush1.msra.mxu0 0.0
        %1164 = vmatprep.subr.mxu0 0.0
        %1165 = vmatpush1.msra.mxu0 %v981
        %1166 = vmatprep.subr.mxu0 0.0
        %1167 = vmatpush1.msra.mxu0 %v980
        %1168 = vmatprep.subr.mxu0 0.0
        %1169 = vmatpush1.msra.mxu0 %v979
        %1170 = vmatprep.subr.mxu0 0.0
        %1171 = vmatpush1.msra.mxu0 %v978
        %1172 = vmatprep.subr.mxu0 0.0
        %1173 = vmatpush2.msra.mxu0 0.0
        %1174 = vmatprep.subr.mxu0 0.0
        %1175 = vmatpush2.msra.mxu0 0.0
        %1176 = vmatprep.subr.mxu0 0.0
        %1177 = vmatpush2.msra.mxu0 0.0
        %1178 = vmatprep.subr.mxu0 0.0
        %1179 = vmatpush2.msra.mxu0 0.0
        %1180 = vmatprep.subr.mxu0 0.0
        %1181 = vmatpush2.msra.mxu0 0.0
        %1182 = vmatprep.subr.mxu0 0.0
        %1183 = vmatpush2.msra.mxu0 0.0
        %1184 = vmatprep.subr.mxu0 0.0
        %1185 = vmatpush2.msra.mxu0 0.0
        %1186 = vmatprep.subr.mxu0 0.0
        %1187 = vmatpush2.msra.mxu0 0.0
        %1188 = vmatprep.subr.mxu0 0.0
        %1189 = vmatpush2.msra.mxu0 0.0
        %1190 = vmatprep.subr.mxu0 0.0
        %1191 = vmatpush2.msra.mxu0 0.0
        %1192 = vmatprep.subr.mxu0 0.0
        %1193 = vmatpush2.msra.mxu0 0.0
        %1194 = vmatprep.subr.mxu0 0.0
        %1195 = vmatpush2.msra.mxu0 0.0
        %1196 = vmatprep.subr.mxu0 0.0
        %1197 = vmatpush2.msra.mxu0 0.0
        %1198 = vmatprep.subr.mxu0 0.0
        %1199 = vmatpush2.msra.mxu0 0.0
        %1200 = vmatprep.subr.mxu0 0.0
        %1201 = vmatpush2.msra.mxu0 0.0
        %1202 = vmatprep.subr.mxu0 0.0
        %1203 = vmatpush2.msra.mxu0 0.0
        %1204 = vmatprep.mubr.f32.mxu0 0.0
        %1205 = vmatmul.mubr.f32.gmra.mxu0 %v1117
        %v1206 = vpop.f32.mrf.mxu0
        %v1207 = vadd.f32 %v1078, %v1206
        %v1208 = vpop.f32.mrf.mxu0
        %1209 = vmatprep.mubr.f32.mxu0 0.0
        %1210 = vmatmul.mubr.f32.gmra.mxu0 %v1120
        %v1211 = vpop.f32.mrf.mxu0
        %v1212 = vadd.f32 %v1083, %v1211
        %v1213 = vpop.f32.mrf.mxu0
        %1214 = vmatprep.mubr.f32.mxu0 0.0
        %1215 = vmatmul.mubr.f32.gmra.mxu0 %v1123
        %v1216 = vpop.f32.mrf.mxu0
        %v1217 = vadd.f32 %v1088, %v1216
        %v1218 = vpop.f32.mrf.mxu0
        %1219 = vmatprep.mubr.f32.mxu0 0.0
        %1220 = vmatmul.mubr.f32.gmra.mxu0 %v1126
        %v1221 = vpop.f32.mrf.mxu0
        %v1222 = vadd.f32 %v1093, %v1221
        %v1223 = vpop.f32.mrf.mxu0
        %1224 = vmatprep.mubr.f32.mxu0 0.0
        %1225 = vmatmul.mubr.f32.gmra.mxu0 %v1129
        %v1226 = vpop.f32.mrf.mxu0
        %v1227 = vadd.f32 %v1098, %v1226
        %v1228 = vpop.f32.mrf.mxu0
        %1229 = vmatprep.mubr.f32.mxu0 0.0
        %1230 = vmatmul.mubr.f32.gmra.mxu0 %v1132
        %v1231 = vpop.f32.mrf.mxu0
        %v1232 = vadd.f32 %v1103, %v1231
        %v1233 = vpop.f32.mrf.mxu0
        %1234 = vmatprep.mubr.f32.mxu0 0.0
        %1235 = vmatmul.mubr.f32.gmra.mxu0 %v1135
        %v1236 = vpop.f32.mrf.mxu0
        %v1237 = vadd.f32 %v1108, %v1236
        %v1238 = vpop.f32.mrf.mxu0
        %1239 = vmatprep.mubr.f32.mxu0 0.0
        %1240 = vmatmul.mubr.f32.gmra.mxu0 %v1138
        %v1241 = vpop.f32.mrf.mxu0
        %v1242 = vadd.f32 %v1113, %v1241
        %v1243 = vpop.f32.mrf.mxu0
        %1244 = vdwg.mxu0
        %v1245 = vld [vmem:[#allocation6 + $0x40] sm:$0xff]
        %v1246 = vld [vmem:[#allocation6 + $0x48] sm:$0xff]
        %v1247 = vld [vmem:[#allocation6 + $0x50] sm:$0xff]
        %v1248 = vld [vmem:[#allocation6 + $0x58] sm:$0xff]
        %v1250 = vsel %vm986, %v970, 0
        %v1253 = vsel %vm986, %v971, 0
        %v1256 = vsel %vm986, %v972, 0
        %v1259 = vsel %vm986, %v973, 0
        %v1262 = vsel %vm986, %v974, 0
        %v1265 = vsel %vm986, %v975, 0
        %v1268 = vsel %vm986, %v976, 0
        %v1271 = vsel %vm986, %v977, 0
        %1273 = vmatprep.subr.mxu0 0.0
        %1274 = vmatpush1.msra.mxu0 0.0
        %1275 = vmatprep.subr.mxu0 0.0
        %1276 = vmatpush1.msra.mxu0 0.0
        %1277 = vmatprep.subr.mxu0 0.0
        %1278 = vmatpush1.msra.mxu0 0.0
        %1279 = vmatprep.subr.mxu0 0.0
        %1280 = vmatpush1.msra.mxu0 0.0
        %1281 = vmatprep.subr.mxu0 0.0
        %1282 = vmatpush1.msra.mxu0 0.0
        %1283 = vmatprep.subr.mxu0 0.0
        %1284 = vmatpush1.msra.mxu0 0.0
        %1285 = vmatprep.subr.mxu0 0.0
        %1286 = vmatpush1.msra.mxu0 0.0
        %1287 = vmatprep.subr.mxu0 0.0
        %1288 = vmatpush1.msra.mxu0 0.0
        %1289 = vmatprep.subr.mxu0 0.0
        %1290 = vmatpush1.msra.mxu0 0.0
        %1291 = vmatprep.subr.mxu0 0.0
        %1292 = vmatpush1.msra.mxu0 0.0
        %1293 = vmatprep.subr.mxu0 0.0
        %1294 = vmatpush1.msra.mxu0 0.0
        %1295 = vmatprep.subr.mxu0 0.0
        %1296 = vmatpush1.msra.mxu0 0.0
        %1297 = vmatprep.subr.mxu0 0.0
        %1298 = vmatpush1.msra.mxu0 %v1248
        %1299 = vmatprep.subr.mxu0 0.0
        %1300 = vmatpush1.msra.mxu0 %v1247
        %1301 = vmatprep.subr.mxu0 0.0
        %1302 = vmatpush1.msra.mxu0 %v1246
        %1303 = vmatprep.subr.mxu0 0.0
        %1304 = vmatpush1.msra.mxu0 %v1245
        %1305 = vmatprep.subr.mxu0 0.0
        %1306 = vmatpush2.msra.mxu0 0.0
        %1307 = vmatprep.subr.mxu0 0.0
        %1308 = vmatpush2.msra.mxu0 0.0
        %1309 = vmatprep.subr.mxu0 0.0
        %1310 = vmatpush2.msra.mxu0 0.0
        %1311 = vmatprep.subr.mxu0 0.0
        %1312 = vmatpush2.msra.mxu0 0.0
        %1313 = vmatprep.subr.mxu0 0.0
        %1314 = vmatpush2.msra.mxu0 0.0
        %1315 = vmatprep.subr.mxu0 0.0
        %1316 = vmatpush2.msra.mxu0 0.0
        %1317 = vmatprep.subr.mxu0 0.0
        %1318 = vmatpush2.msra.mxu0 0.0
        %1319 = vmatprep.subr.mxu0 0.0
        %1320 = vmatpush2.msra.mxu0 0.0
        %1321 = vmatprep.subr.mxu0 0.0
        %1322 = vmatpush2.msra.mxu0 0.0
        %1323 = vmatprep.subr.mxu0 0.0
        %1324 = vmatpush2.msra.mxu0 0.0
        %1325 = vmatprep.subr.mxu0 0.0
        %1326 = vmatpush2.msra.mxu0 0.0
        %1327 = vmatprep.subr.mxu0 0.0
        %1328 = vmatpush2.msra.mxu0 0.0
        %1329 = vmatprep.subr.mxu0 0.0
        %1330 = vmatpush2.msra.mxu0 0.0
        %1331 = vmatprep.subr.mxu0 0.0
        %1332 = vmatpush2.msra.mxu0 0.0
        %1333 = vmatprep.subr.mxu0 0.0
        %1334 = vmatpush2.msra.mxu0 0.0
        %1335 = vmatprep.subr.mxu0 0.0
        %1336 = vmatpush2.msra.mxu0 0.0
        %1337 = vmatprep.mubr.f32.mxu0 0.0
        %1338 = vmatmul.mubr.f32.gmra.mxu0 %v1250
        %v1339 = vpop.f32.mrf.mxu0
        %v1340 = vadd.f32 0.0, %v1339
        %v1341 = vpop.f32.mrf.mxu0
        %1342 = vmatprep.mubr.f32.mxu0 0.0
        %1343 = vmatmul.mubr.f32.gmra.mxu0 %v1253
        %v1344 = vpop.f32.mrf.mxu0
        %v1345 = vadd.f32 0.0, %v1344
        %v1346 = vpop.f32.mrf.mxu0
        %1347 = vmatprep.mubr.f32.mxu0 0.0
        %1348 = vmatmul.mubr.f32.gmra.mxu0 %v1256
        %v1349 = vpop.f32.mrf.mxu0
        %v1350 = vadd.f32 0.0, %v1349
        %v1351 = vpop.f32.mrf.mxu0
        %1352 = vmatprep.mubr.f32.mxu0 0.0
        %1353 = vmatmul.mubr.f32.gmra.mxu0 %v1259
        %v1354 = vpop.f32.mrf.mxu0
        %v1355 = vadd.f32 0.0, %v1354
        %v1356 = vpop.f32.mrf.mxu0
        %1357 = vmatprep.mubr.f32.mxu0 0.0
        %1358 = vmatmul.mubr.f32.gmra.mxu0 %v1262
        %v1359 = vpop.f32.mrf.mxu0
        %v1360 = vadd.f32 0.0, %v1359
        %v1361 = vpop.f32.mrf.mxu0
        %1362 = vmatprep.mubr.f32.mxu0 0.0
        %1363 = vmatmul.mubr.f32.gmra.mxu0 %v1265
        %v1364 = vpop.f32.mrf.mxu0
        %v1365 = vadd.f32 0.0, %v1364
        %v1366 = vpop.f32.mrf.mxu0
        %1367 = vmatprep.mubr.f32.mxu0 0.0
        %1368 = vmatmul.mubr.f32.gmra.mxu0 %v1268
        %v1369 = vpop.f32.mrf.mxu0
        %v1370 = vadd.f32 0.0, %v1369
        %v1371 = vpop.f32.mrf.mxu0
        %1372 = vmatprep.mubr.f32.mxu0 0.0
        %1373 = vmatmul.mubr.f32.gmra.mxu0 %v1271
        %v1374 = vpop.f32.mrf.mxu0
        %v1375 = vadd.f32 0.0, %v1374
        %v1376 = vpop.f32.mrf.mxu0
        %1377 = vdwg.mxu0
        %v1378 = vadd.f32 %v1207, %v1340
        %v1379 = vadd.f32 %v1212, %v1345
        %v1380 = vadd.f32 %v1217, %v1350
        %v1381 = vadd.f32 %v1222, %v1355
        %v1382 = vadd.f32 %v1227, %v1360
        %v1383 = vadd.f32 %v1232, %v1365
        %v1384 = vadd.f32 %v1237, %v1370
        %v1385 = vadd.f32 %v1242, %v1375
        %v1386 = vld [vmem:[#allocation7] sm:$0x1]
        %v1387 = vlaneseq
        %v1388 = vshrl.u32 %v1387, 7
        %v1389 = vsub.s32 0, %v1388
        %v1390 = vrot.slane %v1386, %v1389
        %v1391 = vadd.f32 %v1378, %v1390
        %v1392 = vadd.f32 %v1379, %v1390
        %v1393 = vadd.f32 %v1380, %v1390
        %v1394 = vadd.f32 %v1381, %v1390
        %v1395 = vadd.f32 %v1382, %v1390
        %v1396 = vadd.f32 %v1383, %v1390
        %v1397 = vadd.f32 %v1384, %v1390
        %v1398 = vadd.f32 %v1385, %v1390
        %v1399 = vmul.f32 %v1391, 0.01
        %v1400 = vmul.f32 %v1392, 0.01
        %v1401 = vmul.f32 %v1393, 0.01
        %v1402 = vmul.f32 %v1394, 0.01
        %v1403 = vmul.f32 %v1395, 0.01
        %v1404 = vmul.f32 %v1396, 0.01
        %v1405 = vmul.f32 %v1397, 0.01
        %v1406 = vmul.f32 %v1398, 0.01
        %v1407 = vmax.f32 %v1391, %v1399
        %v1408 = vmax.f32 %v1392, %v1400
        %v1409 = vmax.f32 %v1393, %v1401
        %v1410 = vmax.f32 %v1394, %v1402
        %v1411 = vmax.f32 %v1395, %v1403
        %v1412 = vmax.f32 %v1396, %v1404
        %v1413 = vmax.f32 %v1397, %v1405
        %v1414 = vmax.f32 %v1398, %v1406
        %v1415 = vld [vmem:[#allocation6 + $0x60] sm:$0xff]
        %v1416 = vld [vmem:[#allocation6 + $0x68] sm:$0xff]
        %v1417 = vld [vmem:[#allocation6 + $0x70] sm:$0xff]
        %v1418 = vld [vmem:[#allocation6 + $0x78] sm:$0xff]
        %v1419 = vld [vmem:[#allocation6 + $0x80] sm:$0xff]
        %v1420 = vld [vmem:[#allocation6 + $0x88] sm:$0xff]
        %v1421 = vld [vmem:[#allocation6 + $0x90] sm:$0xff]
        %v1422 = vld [vmem:[#allocation6 + $0x98] sm:$0xff]
        %v1423 = vld [vmem:[#allocation6 + $0xa0] sm:$0xff]
        %v1424 = vld [vmem:[#allocation6 + $0xa8] sm:$0xff]
        %v1425 = vld [vmem:[#allocation6 + $0xb0] sm:$0xff]
        %v1426 = vld [vmem:[#allocation6 + $0xb8] sm:$0xff]
        %v1427 = vld [vmem:[#allocation6 + $0xc0] sm:$0xff]
        %v1428 = vld [vmem:[#allocation6 + $0xc8] sm:$0xff]
        %v1429 = vld [vmem:[#allocation6 + $0xd0] sm:$0xff]
        %v1430 = vld [vmem:[#allocation6 + $0xd8] sm:$0xff]
        %v1431 = vld [vmem:[#allocation7 + $0x1] sm:$0x1]
        %v1432 = vlaneseq
        %v1433 = vshrl.u32 %v1432, 7
        %v1434 = vsub.s32 0, %v1433
        %v1435 = vrot.slane %v1431, %v1434
        %1436 = vmatprep.subr.mxu0 0.0
        %1437 = vmatpush1.msra.mxu0 %v1430
        %1438 = vmatprep.subr.mxu0 0.0
        %1439 = vmatpush1.msra.mxu0 %v1429
        %1440 = vmatprep.subr.mxu0 0.0
        %1441 = vmatpush1.msra.mxu0 %v1428
        %1442 = vmatprep.subr.mxu0 0.0
        %1443 = vmatpush1.msra.mxu0 %v1427
        %1444 = vmatprep.subr.mxu0 0.0
        %1445 = vmatpush1.msra.mxu0 %v1426
        %1446 = vmatprep.subr.mxu0 0.0
        %1447 = vmatpush1.msra.mxu0 %v1425
        %1448 = vmatprep.subr.mxu0 0.0
        %1449 = vmatpush1.msra.mxu0 %v1424
        %1450 = vmatprep.subr.mxu0 0.0
        %1451 = vmatpush1.msra.mxu0 %v1423
        %1452 = vmatprep.subr.mxu0 0.0
        %1453 = vmatpush1.msra.mxu0 %v1422
        %1454 = vmatprep.subr.mxu0 0.0
        %1455 = vmatpush1.msra.mxu0 %v1421
        %1456 = vmatprep.subr.mxu0 0.0
        %1457 = vmatpush1.msra.mxu0 %v1420
        %1458 = vmatprep.subr.mxu0 0.0
        %1459 = vmatpush1.msra.mxu0 %v1419
        %1460 = vmatprep.subr.mxu0 0.0
        %1461 = vmatpush1.msra.mxu0 %v1418
        %1462 = vmatprep.subr.mxu0 0.0
        %1463 = vmatpush1.msra.mxu0 %v1417
        %1464 = vmatprep.subr.mxu0 0.0
        %1465 = vmatpush1.msra.mxu0 %v1416
        %1466 = vmatprep.subr.mxu0 0.0
        %1467 = vmatpush1.msra.mxu0 %v1415
        %1468 = vmatprep.subr.mxu0 0.0
        %1469 = vmatpush2.msra.mxu0 0.0
        %1470 = vmatprep.subr.mxu0 0.0
        %1471 = vmatpush2.msra.mxu0 0.0
        %1472 = vmatprep.subr.mxu0 0.0
        %1473 = vmatpush2.msra.mxu0 0.0
        %1474 = vmatprep.subr.mxu0 0.0
        %1475 = vmatpush2.msra.mxu0 0.0
        %1476 = vmatprep.subr.mxu0 0.0
        %1477 = vmatpush2.msra.mxu0 0.0
        %1478 = vmatprep.subr.mxu0 0.0
        %1479 = vmatpush2.msra.mxu0 0.0
        %1480 = vmatprep.subr.mxu0 0.0
        %1481 = vmatpush2.msra.mxu0 0.0
        %1482 = vmatprep.subr.mxu0 0.0
        %1483 = vmatpush2.msra.mxu0 0.0
        %1484 = vmatprep.subr.mxu0 0.0
        %1485 = vmatpush2.msra.mxu0 0.0
        %1486 = vmatprep.subr.mxu0 0.0
        %1487 = vmatpush2.msra.mxu0 0.0
        %1488 = vmatprep.subr.mxu0 0.0
        %1489 = vmatpush2.msra.mxu0 0.0
        %1490 = vmatprep.subr.mxu0 0.0
        %1491 = vmatpush2.msra.mxu0 0.0
        %1492 = vmatprep.subr.mxu0 0.0
        %1493 = vmatpush2.msra.mxu0 0.0
        %1494 = vmatprep.subr.mxu0 0.0
        %1495 = vmatpush2.msra.mxu0 0.0
        %1496 = vmatprep.subr.mxu0 0.0
        %1497 = vmatpush2.msra.mxu0 0.0
        %1498 = vmatprep.subr.mxu0 0.0
        %1499 = vmatpush2.msra.mxu0 0.0
        %1500 = vmatprep.mubr.f32.mxu0 0.0
        %1501 = vmatmul.mubr.f32.gmra.mxu0 %v1407
        %v1502 = vpop.f32.mrf.mxu0
        %v1503 = vadd.f32 %v1435, %v1502
        %v1504 = vpop.f32.mrf.mxu0
        %1505 = vmatprep.mubr.f32.mxu0 0.0
        %1506 = vmatmul.mubr.f32.gmra.mxu0 %v1408
        %v1507 = vpop.f32.mrf.mxu0
        %v1508 = vadd.f32 %v1435, %v1507
        %v1509 = vpop.f32.mrf.mxu0
        %1510 = vmatprep.mubr.f32.mxu0 0.0
        %1511 = vmatmul.mubr.f32.gmra.mxu0 %v1409
        %v1512 = vpop.f32.mrf.mxu0
        %v1513 = vadd.f32 %v1435, %v1512
        %v1514 = vpop.f32.mrf.mxu0
        %1515 = vmatprep.mubr.f32.mxu0 0.0
        %1516 = vmatmul.mubr.f32.gmra.mxu0 %v1410
        %v1517 = vpop.f32.mrf.mxu0
        %v1518 = vadd.f32 %v1435, %v1517
        %v1519 = vpop.f32.mrf.mxu0
        %1520 = vmatprep.mubr.f32.mxu0 0.0
        %1521 = vmatmul.mubr.f32.gmra.mxu0 %v1411
        %v1522 = vpop.f32.mrf.mxu0
        %v1523 = vadd.f32 %v1435, %v1522
        %v1524 = vpop.f32.mrf.mxu0
        %1525 = vmatprep.mubr.f32.mxu0 0.0
        %1526 = vmatmul.mubr.f32.gmra.mxu0 %v1412
        %v1527 = vpop.f32.mrf.mxu0
        %v1528 = vadd.f32 %v1435, %v1527
        %v1529 = vpop.f32.mrf.mxu0
        %1530 = vmatprep.mubr.f32.mxu0 0.0
        %1531 = vmatmul.mubr.f32.gmra.mxu0 %v1413
        %v1532 = vpop.f32.mrf.mxu0
        %v1533 = vadd.f32 %v1435, %v1532
        %v1534 = vpop.f32.mrf.mxu0
        %1535 = vmatprep.mubr.f32.mxu0 0.0
        %1536 = vmatmul.mubr.f32.gmra.mxu0 %v1414
        %v1537 = vpop.f32.mrf.mxu0
        %v1538 = vadd.f32 %v1435, %v1537
        %v1539 = vpop.f32.mrf.mxu0
        %1540 = vdwg.mxu0
        %v1541 = vmul.f32 %v1503, 0.5
        %v1542 = vmul.f32 %v1508, 0.5
        %v1543 = vmul.f32 %v1513, 0.5
        %v1544 = vmul.f32 %v1518, 0.5
        %v1545 = vmul.f32 %v1523, 0.5
        %v1546 = vmul.f32 %v1528, 0.5
        %v1547 = vmul.f32 %v1533, 0.5
        %v1548 = vmul.f32 %v1538, 0.5
        %v1549 = vtanh.pop %v1541
        %v1550 = vtanh.pop %v1542
        %v1551 = vtanh.pop %v1543
        %v1552 = vtanh.pop %v1544
        %v1553 = vtanh.pop %v1545
        %v1554 = vtanh.pop %v1546
        %v1555 = vtanh.pop %v1547
        %v1556 = vtanh.pop %v1548
        %v1557 = vmul.f32 %v1549, 0.5
        %v1558 = vmul.f32 %v1550, 0.5
        %v1559 = vmul.f32 %v1551, 0.5
        %v1560 = vmul.f32 %v1552, 0.5
        %v1561 = vmul.f32 %v1553, 0.5
        %v1562 = vmul.f32 %v1554, 0.5
        %v1563 = vmul.f32 %v1555, 0.5
        %v1564 = vmul.f32 %v1556, 0.5
        %v1565 = vadd.f32 %v1557, 0.5
        %v1566 = vadd.f32 %v1558, 0.5
        %v1567 = vadd.f32 %v1559, 0.5
        %v1568 = vadd.f32 %v1560, 0.5
        %v1569 = vadd.f32 %v1561, 0.5
        %v1570 = vadd.f32 %v1562, 0.5
        %v1571 = vadd.f32 %v1563, 0.5
        %v1572 = vadd.f32 %v1564, 0.5
        %v1573 = vld [vmem:[#allocation6 + $0xe0] sm:$0xff]
        %v1574 = vld [vmem:[#allocation6 + $0xe8] sm:$0xff]
        %v1575 = vld [vmem:[#allocation6 + $0xf0] sm:$0xff]
        %v1576 = vld [vmem:[#allocation6 + $0xf8] sm:$0xff]
        %v1577 = vld [vmem:[#allocation6 + $0x100] sm:$0xff]
        %v1578 = vld [vmem:[#allocation6 + $0x108] sm:$0xff]
        %v1579 = vld [vmem:[#allocation6 + $0x110] sm:$0xff]
        %v1580 = vld [vmem:[#allocation6 + $0x118] sm:$0xff]
        %v1581 = vld [vmem:[#allocation6 + $0x120] sm:$0xff]
        %v1582 = vld [vmem:[#allocation6 + $0x128] sm:$0xff]
        %v1583 = vld [vmem:[#allocation6 + $0x130] sm:$0xff]
        %v1584 = vld [vmem:[#allocation6 + $0x138] sm:$0xff]
        %v1585 = vld [vmem:[#allocation6 + $0x140] sm:$0xff]
        %v1586 = vld [vmem:[#allocation6 + $0x148] sm:$0xff]
        %v1587 = vld [vmem:[#allocation6 + $0x150] sm:$0xff]
        %v1588 = vld [vmem:[#allocation6 + $0x158] sm:$0xff]
        %v1589 = vld [vmem:[#allocation7 + $0x2] sm:$0x1]
        %v1590 = vlaneseq
        %v1591 = vshrl.u32 %v1590, 7
        %v1592 = vsub.s32 0, %v1591
        %v1593 = vrot.slane %v1589, %v1592
        %1594 = vmatprep.subr.mxu0 0.0
        %1595 = vmatpush1.msra.mxu0 %v1588
        %1596 = vmatprep.subr.mxu0 0.0
        %1597 = vmatpush1.msra.mxu0 %v1587
        %1598 = vmatprep.subr.mxu0 0.0
        %1599 = vmatpush1.msra.mxu0 %v1586
        %1600 = vmatprep.subr.mxu0 0.0
        %1601 = vmatpush1.msra.mxu0 %v1585
        %1602 = vmatprep.subr.mxu0 0.0
        %1603 = vmatpush1.msra.mxu0 %v1584
        %1604 = vmatprep.subr.mxu0 0.0
        %1605 = vmatpush1.msra.mxu0 %v1583
        %1606 = vmatprep.subr.mxu0 0.0
        %1607 = vmatpush1.msra.mxu0 %v1582
        %1608 = vmatprep.subr.mxu0 0.0
        %1609 = vmatpush1.msra.mxu0 %v1581
        %1610 = vmatprep.subr.mxu0 0.0
        %1611 = vmatpush1.msra.mxu0 %v1580
        %1612 = vmatprep.subr.mxu0 0.0
        %1613 = vmatpush1.msra.mxu0 %v1579
        %1614 = vmatprep.subr.mxu0 0.0
        %1615 = vmatpush1.msra.mxu0 %v1578
        %1616 = vmatprep.subr.mxu0 0.0
        %1617 = vmatpush1.msra.mxu0 %v1577
        %1618 = vmatprep.subr.mxu0 0.0
        %1619 = vmatpush1.msra.mxu0 %v1576
        %1620 = vmatprep.subr.mxu0 0.0
        %1621 = vmatpush1.msra.mxu0 %v1575
        %1622 = vmatprep.subr.mxu0 0.0
        %1623 = vmatpush1.msra.mxu0 %v1574
        %1624 = vmatprep.subr.mxu0 0.0
        %1625 = vmatpush1.msra.mxu0 %v1573
        %1626 = vmatprep.subr.mxu0 0.0
        %1627 = vmatpush2.msra.mxu0 0.0
        %1628 = vmatprep.subr.mxu0 0.0
        %1629 = vmatpush2.msra.mxu0 0.0
        %1630 = vmatprep.subr.mxu0 0.0
        %1631 = vmatpush2.msra.mxu0 0.0
        %1632 = vmatprep.subr.mxu0 0.0
        %1633 = vmatpush2.msra.mxu0 0.0
        %1634 = vmatprep.subr.mxu0 0.0
        %1635 = vmatpush2.msra.mxu0 0.0
        %1636 = vmatprep.subr.mxu0 0.0
        %1637 = vmatpush2.msra.mxu0 0.0
        %1638 = vmatprep.subr.mxu0 0.0
        %1639 = vmatpush2.msra.mxu0 0.0
        %1640 = vmatprep.subr.mxu0 0.0
        %1641 = vmatpush2.msra.mxu0 0.0
        %1642 = vmatprep.subr.mxu0 0.0
        %1643 = vmatpush2.msra.mxu0 0.0
        %1644 = vmatprep.subr.mxu0 0.0
        %1645 = vmatpush2.msra.mxu0 0.0
        %1646 = vmatprep.subr.mxu0 0.0
        %1647 = vmatpush2.msra.mxu0 0.0
        %1648 = vmatprep.subr.mxu0 0.0
        %1649 = vmatpush2.msra.mxu0 0.0
        %1650 = vmatprep.subr.mxu0 0.0
        %1651 = vmatpush2.msra.mxu0 0.0
        %1652 = vmatprep.subr.mxu0 0.0
        %1653 = vmatpush2.msra.mxu0 0.0
        %1654 = vmatprep.subr.mxu0 0.0
        %1655 = vmatpush2.msra.mxu0 0.0
        %1656 = vmatprep.subr.mxu0 0.0
        %1657 = vmatpush2.msra.mxu0 0.0
        %1658 = vmatprep.mubr.f32.mxu0 0.0
        %1659 = vmatmul.mubr.f32.gmra.mxu0 %v1565
        %v1660 = vpop.f32.mrf.mxu0
        %v1661 = vadd.f32 %v1593, %v1660
        %v1662 = vpop.f32.mrf.mxu0
        %1663 = vmatprep.mubr.f32.mxu0 0.0
        %1664 = vmatmul.mubr.f32.gmra.mxu0 %v1566
        %v1665 = vpop.f32.mrf.mxu0
        %v1666 = vadd.f32 %v1593, %v1665
        %v1667 = vpop.f32.mrf.mxu0
        %1668 = vmatprep.mubr.f32.mxu0 0.0
        %1669 = vmatmul.mubr.f32.gmra.mxu0 %v1567
        %v1670 = vpop.f32.mrf.mxu0
        %v1671 = vadd.f32 %v1593, %v1670
        %v1672 = vpop.f32.mrf.mxu0
        %1673 = vmatprep.mubr.f32.mxu0 0.0
        %1674 = vmatmul.mubr.f32.gmra.mxu0 %v1568
        %v1675 = vpop.f32.mrf.mxu0
        %v1676 = vadd.f32 %v1593, %v1675
        %v1677 = vpop.f32.mrf.mxu0
        %1678 = vmatprep.mubr.f32.mxu0 0.0
        %1679 = vmatmul.mubr.f32.gmra.mxu0 %v1569
        %v1680 = vpop.f32.mrf.mxu0
        %v1681 = vadd.f32 %v1593, %v1680
        %v1682 = vpop.f32.mrf.mxu0
        %1683 = vmatprep.mubr.f32.mxu0 0.0
        %1684 = vmatmul.mubr.f32.gmra.mxu0 %v1570
        %v1685 = vpop.f32.mrf.mxu0
        %v1686 = vadd.f32 %v1593, %v1685
        %v1687 = vpop.f32.mrf.mxu0
        %1688 = vmatprep.mubr.f32.mxu0 0.0
        %1689 = vmatmul.mubr.f32.gmra.mxu0 %v1571
        %v1690 = vpop.f32.mrf.mxu0
        %v1691 = vadd.f32 %v1593, %v1690
        %v1692 = vpop.f32.mrf.mxu0
        %1693 = vmatprep.mubr.f32.mxu0 0.0
        %1694 = vmatmul.mubr.f32.gmra.mxu0 %v1572
        %v1695 = vpop.f32.mrf.mxu0
        %v1696 = vadd.f32 %v1593, %v1695
        %v1697 = vpop.f32.mrf.mxu0
        %1698 = vdwg.mxu0
        %v1699 = vlaneseq
        %v1700 = vand.u32 %v1699, 127
        %vm1701 = vcmp.lt.s32.totalorder %v1700, 4
        %v1702 = vsel %vm1701, %v1661, -1e+30
        %v1703 = vsel %vm1701, %v1666, -1e+30
        %v1704 = vsel %vm1701, %v1671, -1e+30
        %v1705 = vsel %vm1701, %v1676, -1e+30
        %v1706 = vsel %vm1701, %v1681, -1e+30
        %v1707 = vsel %vm1701, %v1686, -1e+30
        %v1708 = vsel %vm1701, %v1691, -1e+30
        %v1709 = vsel %vm1701, %v1696, -1e+30
        %1710 = vmax.xlane.f32.xlu0 %v1702
        %v1711 = vpop.xlane.xlu0 %1710
        %1712 = vmax.xlane.f32.xlu0 %v1703
        %v1713 = vpop.xlane.xlu0 %1712
        %1714 = vmax.xlane.f32.xlu0 %v1704
        %v1715 = vpop.xlane.xlu0 %1714
        %1716 = vmax.xlane.f32.xlu0 %v1705
        %v1717 = vpop.xlane.xlu0 %1716
        %1718 = vmax.xlane.f32.xlu0 %v1706
        %v1719 = vpop.xlane.xlu0 %1718
        %1720 = vmax.xlane.f32.xlu0 %v1707
        %v1721 = vpop.xlane.xlu0 %1720
        %1722 = vmax.xlane.f32.xlu0 %v1708
        %v1723 = vpop.xlane.xlu0 %1722
        %1724 = vmax.xlane.f32.xlu0 %v1709
        %v1725 = vpop.xlane.xlu0 %1724
        %v1726 = vsub.f32 %v1702, %v1711
        %v1727 = vsub.f32 %v1703, %v1713
        %v1728 = vsub.f32 %v1704, %v1715
        %v1729 = vsub.f32 %v1705, %v1717
        %v1730 = vsub.f32 %v1706, %v1719
        %v1731 = vsub.f32 %v1707, %v1721
        %v1732 = vsub.f32 %v1708, %v1723
        %v1733 = vsub.f32 %v1709, %v1725
        %v1734 = vmul.f32 %v1726, 1.442695
        %v1735 = vpow.pop %v1734
        %v1736 = vmul.f32 %v1727, 1.442695
        %v1737 = vpow.pop %v1736
        %v1738 = vmul.f32 %v1728, 1.442695
        %v1739 = vpow.pop %v1738
        %v1740 = vmul.f32 %v1729, 1.442695
        %v1741 = vpow.pop %v1740
        %v1742 = vmul.f32 %v1730, 1.442695
        %v1743 = vpow.pop %v1742
        %v1744 = vmul.f32 %v1731, 1.442695
        %v1745 = vpow.pop %v1744
        %v1746 = vmul.f32 %v1732, 1.442695
        %v1747 = vpow.pop %v1746
        %v1748 = vmul.f32 %v1733, 1.442695
        %v1749 = vpow.pop %v1748
        %v1750 = vsel %vm1701, %v1735, 0.0
        %v1751 = vsel %vm1701, %v1737, 0.0
        %v1752 = vsel %vm1701, %v1739, 0.0
        %v1753 = vsel %vm1701, %v1741, 0.0
        %v1754 = vsel %vm1701, %v1743, 0.0
        %v1755 = vsel %vm1701, %v1745, 0.0
        %v1756 = vsel %vm1701, %v1747, 0.0
        %v1757 = vsel %vm1701, %v1749, 0.0
        %1758 = vadd.xlane.f32.xlu0 %v1750
        %v1759 = vpop.xlane.xlu0 %1758
        %1760 = vadd.xlane.f32.xlu0 %v1751
        %v1761 = vpop.xlane.xlu0 %1760
        %1762 = vadd.xlane.f32.xlu0 %v1752
        %v1763 = vpop.xlane.xlu0 %1762
        %1764 = vadd.xlane.f32.xlu0 %v1753
        %v1765 = vpop.xlane.xlu0 %1764
        %1766 = vadd.xlane.f32.xlu0 %v1754
        %v1767 = vpop.xlane.xlu0 %1766
        %1768 = vadd.xlane.f32.xlu0 %v1755
        %v1769 = vpop.xlane.xlu0 %1768
        %1770 = vadd.xlane.f32.xlu0 %v1756
        %v1771 = vpop.xlane.xlu0 %1770
        %1772 = vadd.xlane.f32.xlu0 %v1757
        %v1773 = vpop.xlane.xlu0 %1772
        %v1774 = vlog2.pop %v1759
        %v1775 = vmul.f32 %v1774, 0.6931472
        %v1776 = vlog2.pop %v1761
        %v1777 = vmul.f32 %v1776, 0.6931472
        %v1778 = vlog2.pop %v1763
        %v1779 = vmul.f32 %v1778, 0.6931472
        %v1780 = vlog2.pop %v1765
        %v1781 = vmul.f32 %v1780, 0.6931472
        %v1782 = vlog2.pop %v1767
        %v1783 = vmul.f32 %v1782, 0.6931472
        %v1784 = vlog2.pop %v1769
        %v1785 = vmul.f32 %v1784, 0.6931472
        %v1786 = vlog2.pop %v1771
        %v1787 = vmul.f32 %v1786, 0.6931472
        %v1788 = vlog2.pop %v1773
        %v1789 = vmul.f32 %v1788, 0.6931472
        %v1790 = vsub.f32 %v1726, %v1775
        %v1791 = vsub.f32 %v1727, %v1777
        %v1792 = vsub.f32 %v1728, %v1779
        %v1793 = vsub.f32 %v1729, %v1781
        %v1794 = vsub.f32 %v1730, %v1783
        %v1795 = vsub.f32 %v1731, %v1785
        %v1796 = vsub.f32 %v1732, %v1787
        %v1797 = vsub.f32 %v1733, %v1789
        %vm1798 = vcmask 64512
        %1799 = vst.msk [vmem:[%s290] sm:$0xff] %vm1798, %v1790
        %1800 = vst.msk [vmem:[%s290 + $0x8] sm:$0xff] %vm1798, %v1791
        %1801 = vst.msk [vmem:[%s290 + $0x10] sm:$0xff] %vm1798, %v1792
        %1802 = vst.msk [vmem:[%s290 + $0x18] sm:$0xff] %vm1798, %v1793
        %1803 = vst.msk [vmem:[%s290 + $0x20] sm:$0xff] %vm1798, %v1794
        %1804 = vst.msk [vmem:[%s290 + $0x28] sm:$0xff] %vm1798, %v1795
        %1805 = vst.msk [vmem:[%s290 + $0x30] sm:$0xff] %vm1798, %v1796
        %1806 = vst.msk [vmem:[%s290 + $0x38] sm:$0xff] %vm1798, %v1797
        %s1807 = smul.u32 8, %s22
        %p1808 = scmp.lt.s32.totalorder %s1807, 31
        %s1809 = scalar_select %p1808, %s1807, 31
        %s1810 = smul.addr %s1809, 8
        %s1811 = scalar_lea.vmem %s4, %s1810
        // Predicated region
        $region53: #{tpu_custom_call.1} parent=35 // pred_check
          %p1812 = pneg %p134
        $region54: #{tpu_custom_call.1} parent=35 // pred_check_branch
          %1814 = sbr.rel (%p1812) target = $region56
        $region55: #{tpu_custom_call.1} parent=35 // pred_region
          %s1815 = smul.u32 8, %s22
        $region56: #{tpu_custom_call.1} parent=35 // pred_fallthru
          _
      $region36: #{tpu_custom_call.1} parent=5 // pred_fallthru
        _
      %p1816 = scmp.le.s32.totalorder 2, %s17
      // Predicated region
      $region57: #{tpu_custom_call.1} parent=5 // pred_check
        %p1817 = pneg %p1816
      $region58: #{tpu_custom_call.1} parent=5 // pred_check_branch
        %1819 = sbr.rel (%p1817) target = $region60
      $region59: #{tpu_custom_call.1} parent=5 // pred_region
        %s1820 = ssub.s32 %s17, 2
        // Predicated region
        $region61: #{tpu_custom_call.1} parent=59 // pred_check
          %p1821 = pneg %p140
        $region62: #{tpu_custom_call.1} parent=59 // pred_check_branch
          %1823 = sbr.rel (%p1821) target = $region64
        $region63: #{tpu_custom_call.1} parent=59 // pred_region
          %s1824 = smul.u32 8, %s23
          %p1825 = scmp.lt.s32.totalorder %s1824, 31
          %s1826 = scalar_select %p1825, %s1824, 31
          %s1827 = smul.addr %s1826, 8
          %s1828 = scalar_lea.vmem %s4, %s1827
        $region64: #{tpu_custom_call.1} parent=59 // pred_fallthru
          _
      $region60: #{tpu_custom_call.1} parent=5 // pred_fallthru
        _
    $region6: #{tpu_custom_call.1} parent=1 // loop_footer
      %s21 = sadd.s32 1, %s17
    $region7: #{tpu_custom_call.1} parent=1 // loop_footer_branch
      %16 = sbr.rel target = $region3
    $region8: #{tpu_custom_call.1} parent=1 // loop_exit
      _
    %1829 = vsyncpa [#allocation3], 1
    %s1830 = scalar_lea.sflag [#allocation3], 1
    %1831 = vsyncpa %s1830, 1
    %1832 = vsyncpa [#allocation5], 1
    %s1833 = scalar_lea.sflag [#allocation5], 1
    %1834 = vsyncpa %s1833, 1
    %1835 = vsyncpa [#allocation8], 1

</llo_original>
